<compile_context>
chip_gen: v6e
topology: v6e:2x2x1
jax: 0.10.0
libtpu: 0.0.40
codegen_flags: <defaults>
</compile_context>

<pallas_src>
import functools

import jax
import jax.numpy as jnp
from jax.experimental import pallas as pl
from jax.experimental.pallas import tpu as pltpu


def _round_up(n, m):
    return ((n + m - 1) // m) * m


_SEQ_GRAN = 16  # sublane granularity covering both f32 (8) and bf16 (16) tiles


def _choose_seq_tile(seq_len, cap, batch):
    """Pick the sequence tile (trace-time Python ints).

    - Whole sequence in one block when it fits under the cap (no remainder).
    - Otherwise tiles of `cap` (multiple of 16) with a partial trailing block
      that Pallas masks on writeback -- no full-array jnp.pad copies.
    - For batch==1 the cap is lowered to ~S/2 so the grid has >=2 steps and
      both v7x TensorCores get work (harmless on single-TC v5e/v6e).
    """
    cap = max(_SEQ_GRAN, (cap // _SEQ_GRAN) * _SEQ_GRAN)
    if batch == 1 and seq_len > _SEQ_GRAN:
        cap = min(cap, max(_SEQ_GRAN, _round_up((seq_len + 1) // 2, _SEQ_GRAN)))
    if seq_len <= cap:
        return seq_len
    return cap


# ----------------------------- Pallas kernel ------------------------------ #

def _forward_kernel(
    sqrt_a_ref, sqrt_1ma_ref,            # SMEM [B] f32: per-batch diffusion scalars
    tproj_ref,                           # [1, Hp] f32: temb @ W1t + b1 (per batch)
    x_ref, noise_ref,                    # [ts, F] token tiles (any float dtype)
    w1x_ref,                             # [F, Hp]  bf16
    g1_ref, be1_ref,                     # [1, Hp]  f32
    w2_ref,                              # [Hp, Hp] bf16
    b2_ref, g2_ref, be2_ref,             # [1, Hp]  f32
    w3_ref,                              # [Hp, F]  bf16
    b3_ref,                              # [1, F]   f32
    noisy_ref, pred_ref,                 # [ts, F] outputs (io dtype)
    *, hidden_dim,
):
    b = pl.program_id(0)

    x = x_ref[...].astype(jnp.float32)
    nz = noise_ref[...].astype(jnp.float32)

    # --- q(x_t | x_0): noisy = sqrt(a) * x + sqrt(1 - a) * noise (f32 math) --
    noisy = sqrt_a_ref[b] * x + sqrt_1ma_ref[b] * nz
    noisy_ref[...] = noisy.astype(noisy_ref.dtype)

    inv_h = 1.0 / float(hidden_dim)

    def layernorm(h, g, be, eps=1e-5):
        # Padded lanes of h are exactly zero (zero-padded weight columns,
        # biases and tproj), so plain 128-lane sums already equal the sums
        # over the true hidden dim -> no lane mask needed (E[h^2]-mu^2 form).
        mu = jnp.sum(h, axis=-1, keepdims=True) * inv_h
        var = jnp.sum(h * h, axis=-1, keepdims=True) * inv_h - mu * mu
        var = jnp.maximum(var, 0.0)
        return (h - mu) * jax.lax.rsqrt(var + eps) * g + be

    # Layer 1: concat([noisy, temb]) @ W1 + b1
    #        == noisy @ W1x + (temb @ W1t + b1); the time half is per-batch and
    #           arrives pre-projected as one [1, Hp] row (no per-token stream).
    h = jnp.dot(noisy.astype(jnp.bfloat16), w1x_ref[...],
                preferred_element_type=jnp.float32)
    h = h + tproj_ref[...]
    h = jnp.maximum(layernorm(h, g1_ref[...], be1_ref[...]), 0.0)

    h = jnp.dot(h.astype(jnp.bfloat16), w2_ref[...],
                preferred_element_type=jnp.float32) + b2_ref[...]
    h = jnp.maximum(layernorm(h, g2_ref[...], be2_ref[...]), 0.0)

    pred = jnp.dot(h.astype(jnp.bfloat16), w3_ref[...],
                   preferred_element_type=jnp.float32) + b3_ref[...]
    pred_ref[...] = pred.astype(pred_ref.dtype)


@functools.partial(jax.jit, static_argnames=("hidden_dim", "seq_tile", "out_dtype"))
def _noise_pred_forward(x, noise, sqrt_a, sqrt_1ma, tproj, params,
                        *, hidden_dim, seq_tile, out_dtype):
    """x/noise: [B, S, F]; tproj: [B, 1, Hp]; sqrt_a/sqrt_1ma: [B]."""
    B, S, F = x.shape
    Hp = tproj.shape[-1]
    (w1x, g1, be1, w2, b2, g2, be2, w3, b3) = params

    n_tiles = pl.cdiv(S, seq_tile)      # partial trailing block is allowed
    grid = (B, n_tiles)

    tok_spec = pl.BlockSpec((None, seq_tile, F), lambda b, j: (b, j, 0))
    smem_spec = pl.BlockSpec(memory_space=pltpu.MemorySpace.SMEM)

    def full_spec(arr):
        n = arr.ndim
        return pl.BlockSpec(arr.shape, lambda b, j: (0,) * n)

    in_specs = [
        smem_spec, smem_spec,                                  # sqrt_a, sqrt_1ma
        pl.BlockSpec((None, 1, Hp), lambda b, j: (b, 0, 0)),   # per-batch tproj
        tok_spec, tok_spec,                                    # x, noise
        full_spec(w1x), full_spec(g1), full_spec(be1),
        full_spec(w2), full_spec(b2), full_spec(g2), full_spec(be2),
        full_spec(w3), full_spec(b3),
    ]
    out_specs = [tok_spec, tok_spec]
    out_shape = [
        jax.ShapeDtypeStruct((B, S, F), out_dtype),   # noisy_x
        jax.ShapeDtypeStruct((B, S, F), out_dtype),   # pred_noise
    ]

    nbytes = lambda a: a.size * a.dtype.itemsize
    out_bytes = 2 * B * S * F * jnp.dtype(out_dtype).itemsize
    weight_bytes = sum(nbytes(p) for p in params) + nbytes(tproj)
    cost = pl.CostEstimate(
        flops=2 * B * S * (F * Hp + Hp * Hp + Hp * F),
        transcendentals=2 * B * S,                 # one rsqrt per LayerNorm per token
        bytes_accessed=nbytes(x) + nbytes(noise) + out_bytes + weight_bytes,
    )

    kernel = functools.partial(_forward_kernel, hidden_dim=hidden_dim)
    noisy, pred = pl.pallas_call(
        kernel,
        grid=grid,
        in_specs=in_specs,
        out_specs=out_specs,
        out_shape=out_shape,
        cost_estimate=cost,
        compiler_params=pltpu.CompilerParams(
            dimension_semantics=("parallel", "parallel"),
            # ts=8192 token tiles need ~20 MiB (double-buffered streams plus
            # [ts,128] f32 intermediates); 48 MiB leaves headroom while staying
            # under v7x's 64 MiB physical VMEM (v5e/v6e have 128 MiB).
            vmem_limit_bytes=48 * 1024 * 1024),
    )(sqrt_a, sqrt_1ma, tproj, x, noise,
      w1x, g1, be1, w2, b2, g2, be2, w3, b3)
    return noisy, pred


# ------------------------------ Module glue -------------------------------- #

class ConfidenceGuidedSamplerPallas:
    """JAX/Pallas port of ConfidenceGuidedSampler.forward()."""

    def __init__(self, feature_dim=32, hidden_dim=32, num_steps=1000,
                 min_beta=1e-4, max_beta=2e-2, key=None):
        assert hidden_dim % 2 == 0
        self.feature_dim = feature_dim
        self.hidden_dim = hidden_dim
        self.hidden_pad = _round_up(hidden_dim, 128)
        self.num_steps = num_steps

        # noise schedule buffers (register_buffer equivalents)
        betas = jnp.linspace(min_beta, max_beta, num_steps, dtype=jnp.float32)
        self.betas = betas
        self.alphas_cumprod = jnp.cumprod(1.0 - betas)

        # noise_pred_net parameters:
        #   Linear(F+H, H) -> LN(H) -> ReLU -> Linear(H, H) -> LN(H) -> ReLU
        #   -> Linear(H, F)      (weights stored as [in, out])
        if key is None:
            key = jax.random.PRNGKey(0)
        keys = jax.random.split(key, 6)
        scale = 0.05
        F, H, Hp = feature_dim, hidden_dim, self.hidden_pad

        w1 = scale * jax.random.normal(keys[0], (F + H, H), jnp.float32)
        w1x, w1t = w1[:F], w1[F:]                    # split the concat matmul
        b1 = scale * jax.random.normal(keys[1], (1, H), jnp.float32)
        g1 = jnp.ones((1, H), jnp.float32)
        be1 = jnp.zeros((1, H), jnp.float32)
        w2 = scale * jax.random.normal(keys[2], (H, H), jnp.float32)
        b2 = scale * jax.random.normal(keys[3], (1, H), jnp.float32)
        g2 = jnp.ones((1, H), jnp.float32)
        be2 = jnp.zeros((1, H), jnp.float32)
        w3 = scale * jax.random.normal(keys[4], (H, F), jnp.float32)
        b3 = scale * jax.random.normal(keys[5], (1, F), jnp.float32)

        # Unpadded f32 params: per-batch wrapper math + pure-JAX reference.
        self.ref_params = (w1x, w1t, b1, g1, be1, w2, b2, g2, be2, w3, b3)

        # Kernel params: hidden dim zero-padded H -> Hp for a lane-dense hidden
        # path; matmul weights stored in bf16 (MXU-native), LN/bias rows in f32.
        pad_cols = lambda w: jnp.pad(w, ((0, 0), (0, Hp - w.shape[1])))
        self.kernel_params = (
            pad_cols(w1x).astype(jnp.bfloat16),                        # [F, Hp]
            pad_cols(g1), pad_cols(be1),                               # [1, Hp]
            jnp.pad(w2, ((0, Hp - H), (0, Hp - H))).astype(jnp.bfloat16),  # [Hp, Hp]
            pad_cols(b2), pad_cols(g2), pad_cols(be2),                 # [1, Hp]
            jnp.pad(w3, ((0, Hp - H), (0, 0))).astype(jnp.bfloat16),   # [Hp, F]
            b3,                                                        # [1, F]
        )
        # The mask-free LayerNorm relies on padded lanes being exactly zero.
        _zero = lambda a: not bool(jnp.any(a))
        assert _zero(self.kernel_params[0][:, H:])      # W1x padded columns
        assert _zero(self.kernel_params[3][H:, :])      # W2 padded rows
        assert _zero(self.kernel_params[3][:, H:])      # W2 padded columns
        assert _zero(self.kernel_params[7][H:, :])      # W3 padded rows

    def get_time_embedding(self, t):
        """t: [B] int -> [B, hidden_dim] sinusoidal embedding (matches torch)."""
        half = self.hidden_dim // 2
        emb_scale = jnp.log(10000.0) / (half - 1)
        freqs = jnp.exp(jnp.arange(half, dtype=jnp.float32) * -emb_scale)
        args = t.astype(jnp.float32)[:, None] * freqs[None, :]
        return jnp.concatenate([jnp.sin(args), jnp.cos(args)], axis=-1)

    def forward(self, x, noise=None, *, rng=None, max_seq_tile=8192,
                out_dtype=None):
        """x: [B, S, F] -> (noisy_x [B,S,F], pred_noise [B,S,F]).

        out_dtype defaults to x.dtype; pass jnp.bfloat16 to halve the output
        writeback bytes on bandwidth-bound shapes.
        """
        B, S, F = x.shape
        assert F == self.feature_dim
        if rng is None:
            rng = jax.random.PRNGKey(42)
        k_noise, k_t = jax.random.split(rng)
        if noise is None:
            # Drawn directly in bf16: halves the noise HBM stream with no
            # extra convert pass.  See TODO(synk) in the header for in-kernel
            # generation (drops this stream entirely).
            noise = jax.random.normal(k_noise, x.shape, jnp.bfloat16)
        t = jax.random.randint(k_t, (B,), 0, self.num_steps)
        if out_dtype is None:
            out_dtype = x.dtype

        # Per-batch quantities — no per-token alpha / temb streams hit HBM.
        a = self.alphas_cumprod[t]                      # [B]
        sqrt_a = jnp.sqrt(a)
        sqrt_1ma = jnp.sqrt(1.0 - a)

        w1t, b1 = self.ref_params[1], self.ref_params[2]
        temb = self.get_time_embedding(t)               # [B, H]
        tproj = temb @ w1t + b1                         # [B, H] (once per batch)
        Hp = self.hidden_pad
        tproj = jnp.pad(tproj, ((0, 0), (0, Hp - self.hidden_dim)))
        tproj = tproj.reshape(B, 1, Hp)

        seq_tile = _choose_seq_tile(S, max_seq_tile, B)
        noisy, pred = _noise_pred_forward(
            x, noise, sqrt_a, sqrt_1ma, tproj, self.kernel_params,
            hidden_dim=self.hidden_dim, seq_tile=seq_tile, out_dtype=out_dtype)
        return noisy, pred


# ----------------------------- reference check ----------------------------- #

def _reference_forward(model, x, noise, t, *, mimic_kernel):
    """Pure-JAX reference.  mimic_kernel=True mirrors the kernel's precision
    (bf16 matmul operands, f32 accum, E[h^2]-mu^2 LayerNorm); False is the
    plain f32 semantic reference."""
    (w1x, w1t, b1, g1, be1, w2, b2, g2, be2, w3, b3) = model.ref_params
    a = model.alphas_cumprod[t][:, None, None]
    xf = x.astype(jnp.float32)
    nf = noise.astype(jnp.float32)
    noisy = jnp.sqrt(a) * xf + jnp.sqrt(1.0 - a) * nf
    temb = model.get_time_embedding(t)[:, None, :]      # [B, 1, H]
    tproj = temb @ w1t + b1

    if mimic_kernel:
        mm = lambda h, w: jnp.dot(h.astype(jnp.bfloat16).astype(jnp.float32),
                                  w.astype(jnp.bfloat16).astype(jnp.float32))
    else:
        mm = lambda h, w: jnp.dot(h, w)

    def ln(h, g, be, eps=1e-5):
        mu = h.mean(-1, keepdims=True)
        if mimic_kernel:
            var = jnp.maximum((h * h).mean(-1, keepdims=True) - mu * mu, 0.0)
        else:
            var = ((h - mu) ** 2).mean(-1, keepdims=True)
        return (h - mu) * jax.lax.rsqrt(var + eps) * g + be

    h = mm(noisy, w1x) + tproj
    h = jnp.maximum(ln(h, g1, be1), 0.0)
    h = jnp.maximum(ln(mm(h, w2) + b2, g2, be2), 0.0)
    pred = mm(h, w3) + b3
    return noisy, pred


def _run_case(model, x, fwd_key, *, noise=None, max_seq_tile=8192, out_dtype=None):
    noisy, pred = model.forward(x, noise=noise, rng=fwd_key,
                                max_seq_tile=max_seq_tile, out_dtype=out_dtype)
    jax.block_until_ready((noisy, pred))

    # rebuild the same noise / t draws forward used
    B = x.shape[0]
    k_noise, k_t = jax.random.split(fwd_key)
    if noise is None:
        noise = jax.random.normal(k_noise, x.shape, jnp.bfloat16)
    t = jax.random.randint(k_t, (B,), 0, model.num_steps)
    ref_sem = _reference_forward(model, x, noise, t, mimic_kernel=False)
    ref_mim = _reference_forward(model, x, noise, t, mimic_kernel=True)
    return (noisy, pred), ref_sem, ref_mim


def _close(a, b, atol, rtol):
    return bool(jnp.allclose(a, b, atol=atol, rtol=rtol))


if __name__ == "__main__":
    F, H = 32, 32
    model = ConfidenceGuidedSamplerPallas(feature_dim=F, hidden_dim=H,
                                          num_steps=1000,
                                          key=jax.random.PRNGKey(0))
    k_all = jax.random.split(jax.random.PRNGKey(0), 8)

    # Case 1: small aligned shape, explicit f32 noise, f32 outputs (grid (2,1)).
    B, S = 2, 8
    x1 = jax.random.normal(k_all[0], (B, S, F), jnp.float32)
    n1 = jax.random.normal(k_all[1], (B, S, F), jnp.float32)
    (noisy, pred), ref_sem, ref_mim = _run_case(
        model, x1, k_all[2], noise=n1, out_dtype=jnp.float32)
    assert noisy.shape == (B, S, F) and pred.shape == (B, S, F)
    assert _close(noisy, ref_sem[0], atol=1e-5, rtol=1e-5)          # f32 q-sample
    assert _close(pred, ref_mim[1], atol=5e-3, rtol=5e-3)           # precision-matched
    assert _close(pred, ref_sem[1], atol=5e-2, rtol=5e-2)           # semantic sanity

    # Case 2: ragged S + multi-tile grid with a partial trailing block
    # (S=200, tile 64 -> grid (2,4), last block has 8 valid rows), auto bf16
    # noise, bf16 outputs.
    B, S = 2, 200
    x2 = jax.random.normal(k_all[3], (B, S, F), jnp.float32)
    (noisy, pred), ref_sem, ref_mim = _run_case(
        model, x2, k_all[4], noise=None, max_seq_tile=64, out_dtype=jnp.bfloat16)
    assert noisy.shape == (B, S, F) and pred.shape == (B, S, F)
    assert noisy.dtype == jnp.bfloat16 and pred.dtype == jnp.bfloat16
    assert _close(noisy, ref_mim[0], atol=3e-2, rtol=3e-2)
    assert _close(pred, ref_mim[1], atol=3e-2, rtol=3e-2)

    # Case 3: batch==1 path (tile capped at ~S/2 so v7x's two TCs both get a
    # grid step; grid (1,2) with a partial trailing block), f32 outputs.
    B, S = 1, 48
    x3 = jax.random.normal(k_all[5], (B, S, F), jnp.float32)
    (noisy, pred), ref_sem, ref_mim = _run_case(model, x3, k_all[6], noise=None)
    assert noisy.shape == (B, S, F) and pred.shape == (B, S, F)
    assert _close(noisy, ref_sem[0], atol=1e-5, rtol=1e-5)
    assert _close(pred, ref_mim[1], atol=5e-3, rtol=5e-3)

    print("KERNEL_OK")
</pallas_src>

<mosaic_0001>
module attributes {stable_mosaic.version = 11 : i64} {
  func.func @_forward_kernel(%arg0: i32, %arg1: i32, %arg2: memref<2xf32, #tpu.memory_space<smem>>, %arg3: memref<2xf32, #tpu.memory_space<smem>>, %arg4: memref<1x1x128xf32, #tpu.memory_space<vmem>>, %arg5: memref<1x8x32xf32, #tpu.memory_space<vmem>>, %arg6: memref<1x8x32xf32, #tpu.memory_space<vmem>>, %arg7: memref<32x128xbf16, #tpu.memory_space<vmem>>, %arg8: memref<1x128xf32, #tpu.memory_space<vmem>>, %arg9: memref<1x128xf32, #tpu.memory_space<vmem>>, %arg10: memref<128x128xbf16, #tpu.memory_space<vmem>>, %arg11: memref<1x128xf32, #tpu.memory_space<vmem>>, %arg12: memref<1x128xf32, #tpu.memory_space<vmem>>, %arg13: memref<1x128xf32, #tpu.memory_space<vmem>>, %arg14: memref<128x32xbf16, #tpu.memory_space<vmem>>, %arg15: memref<1x32xf32, #tpu.memory_space<vmem>>, %arg16: memref<1x8x32xf32, #tpu.memory_space<vmem>>, %arg17: memref<1x8x32xf32, #tpu.memory_space<vmem>>) attributes {dimension_semantics = [#tpu.dimension_semantics<parallel>, #tpu.dimension_semantics<parallel>], iteration_bounds = array<i64: 2, 1>, scalar_prefetch = 0 : i64, scratch_operands = 0 : i64, tpu.core_type = #tpu.core_type<tc>, window_params = [{transform_indices = @transform_0, window_bounds = array<i64: 2>}, {transform_indices = @transform_1, window_bounds = array<i64: 2>}, {transform_indices = @transform_2, window_bounds = array<i64: 1, 1, 128>}, {transform_indices = @transform_3, window_bounds = array<i64: 1, 8, 32>}, {transform_indices = @transform_4, window_bounds = array<i64: 1, 8, 32>}, {pipeline_mode = #tpu.pipeline_mode<synchronous>, transform_indices = @transform_5, window_bounds = array<i64: 32, 128>}, {pipeline_mode = #tpu.pipeline_mode<synchronous>, transform_indices = @transform_6, window_bounds = array<i64: 1, 128>}, {pipeline_mode = #tpu.pipeline_mode<synchronous>, transform_indices = @transform_7, window_bounds = array<i64: 1, 128>}, {pipeline_mode = #tpu.pipeline_mode<synchronous>, transform_indices = @transform_8, window_bounds = array<i64: 128, 128>}, {pipeline_mode = #tpu.pipeline_mode<synchronous>, transform_indices = @transform_9, window_bounds = array<i64: 1, 128>}, {pipeline_mode = #tpu.pipeline_mode<synchronous>, transform_indices = @transform_10, window_bounds = array<i64: 1, 128>}, {pipeline_mode = #tpu.pipeline_mode<synchronous>, transform_indices = @transform_11, window_bounds = array<i64: 1, 128>}, {pipeline_mode = #tpu.pipeline_mode<synchronous>, transform_indices = @transform_12, window_bounds = array<i64: 128, 32>}, {pipeline_mode = #tpu.pipeline_mode<synchronous>, transform_indices = @transform_13, window_bounds = array<i64: 1, 32>}, {transform_indices = @transform_14, window_bounds = array<i64: 1, 8, 32>}, {transform_indices = @transform_15, window_bounds = array<i64: 1, 8, 32>}]} {
    %c0 = arith.constant 0 : index
    %c0_0 = arith.constant 0 : index
    %c0_1 = arith.constant 0 : index
    %0 = vector.load %arg5[%c0, %c0_0, %c0_1] : memref<1x8x32xf32, #tpu.memory_space<vmem>>, vector<1x8x32xf32>
    %1 = vector.shape_cast %0 : vector<1x8x32xf32> to vector<8x32xf32>
    %c0_2 = arith.constant 0 : index
    %c0_3 = arith.constant 0 : index
    %c0_4 = arith.constant 0 : index
    %2 = vector.load %arg6[%c0_2, %c0_3, %c0_4] : memref<1x8x32xf32, #tpu.memory_space<vmem>>, vector<1x8x32xf32>
    %3 = vector.shape_cast %2 : vector<1x8x32xf32> to vector<8x32xf32>
    %4 = arith.index_cast %arg0 : i32 to index
    %5 = memref.load %arg2[%4] : memref<2xf32, #tpu.memory_space<smem>>
    %6 = vector.broadcast %5 : f32 to vector<8x32xf32>
    %7 = arith.mulf %6, %1 : vector<8x32xf32>
    %8 = arith.index_cast %arg0 : i32 to index
    %9 = memref.load %arg3[%8] : memref<2xf32, #tpu.memory_space<smem>>
    %10 = vector.broadcast %9 : f32 to vector<8x32xf32>
    %11 = arith.mulf %10, %3 : vector<8x32xf32>
    %12 = arith.addf %7, %11 : vector<8x32xf32>
    %c0_5 = arith.constant 0 : index
    %c0_6 = arith.constant 0 : index
    %c0_7 = arith.constant 0 : index
    %13 = vector.load %arg16[%c0_5, %c0_6, %c0_7] : memref<1x8x32xf32, #tpu.memory_space<vmem>>, vector<1x8x32xf32>
    %14 = vector.shape_cast %13 : vector<1x8x32xf32> to vector<8x32xf32>
    %15 = vector.shape_cast %12 : vector<8x32xf32> to vector<1x8x32xf32>
    tpu.vector_store %arg16[%c0_5, %c0_6, %c0_7], %15 {strides = array<i32>} : memref<1x8x32xf32, #tpu.memory_space<vmem>>, vector<1x8x32xf32>,
    %16 = arith.truncf %12 : vector<8x32xf32> to vector<8x32xbf16>
    %c0_8 = arith.constant 0 : index
    %c0_9 = arith.constant 0 : index
    %17 = vector.load %arg7[%c0_8, %c0_9] : memref<32x128xbf16, #tpu.memory_space<vmem>>, vector<32x128xbf16>
    %cst = arith.constant dense<0.000000e+00> : vector<8x128xf32>
    %18 = tpu.matmul %16, %17, %cst {dimension_numbers = #tpu.dot_dimension_numbers<[1], [0], [0], [1], [0, 0, 1, 1], [], []>} : vector<8x32xbf16>, vector<32x128xbf16>, vector<8x128xf32> -> vector<8x128xf32>
    %c0_10 = arith.constant 0 : index
    %c0_11 = arith.constant 0 : index
    %c0_12 = arith.constant 0 : index
    %19 = vector.load %arg4[%c0_10, %c0_11, %c0_12] : memref<1x1x128xf32, #tpu.memory_space<vmem>>, vector<1x1x128xf32>
    %20 = vector.shape_cast %19 : vector<1x1x128xf32> to vector<1x128xf32>
    %21 = vector.broadcast %20 : vector<1x128xf32> to vector<8x128xf32>
    %22 = arith.addf %18, %21 : vector<8x128xf32>
    %c0_13 = arith.constant 0 : index
    %c0_14 = arith.constant 0 : index
    %23 = vector.load %arg8[%c0_13, %c0_14] : memref<1x128xf32, #tpu.memory_space<vmem>>, vector<1x128xf32>
    %c0_15 = arith.constant 0 : index
    %c0_16 = arith.constant 0 : index
    %24 = vector.load %arg9[%c0_15, %c0_16] : memref<1x128xf32, #tpu.memory_space<vmem>>, vector<1x128xf32>
    %cst_17 = arith.constant dense<0.000000e+00> : vector<8xf32>
    %25 = vector.multi_reduction <add>, %22, %cst_17 [1] : vector<8x128xf32> to vector<8xf32>
    %26 = vector.shape_cast %25 : vector<8xf32> to vector<8x1xf32>
    %cst_18 = arith.constant 3.125000e-02 : f32
    %27 = vector.broadcast %cst_18 : f32 to vector<8x1xf32>
    %28 = arith.mulf %26, %27 : vector<8x1xf32>
    %29 = arith.mulf %22, %22 : vector<8x128xf32>
    %cst_19 = arith.constant dense<0.000000e+00> : vector<8xf32>
    %30 = vector.multi_reduction <add>, %29, %cst_19 [1] : vector<8x128xf32> to vector<8xf32>
    %31 = vector.shape_cast %30 : vector<8xf32> to vector<8x1xf32>
    %cst_20 = arith.constant 3.125000e-02 : f32
    %32 = vector.broadcast %cst_20 : f32 to vector<8x1xf32>
    %33 = arith.mulf %31, %32 : vector<8x1xf32>
    %34 = arith.mulf %28, %28 : vector<8x1xf32>
    %35 = arith.subf %33, %34 : vector<8x1xf32>
    %cst_21 = arith.constant 0.000000e+00 : f32
    %36 = vector.broadcast %cst_21 : f32 to vector<8x1xf32>
    %37 = arith.maximumf %35, %36 : vector<8x1xf32>
    %38 = vector.broadcast %28 : vector<8x1xf32> to vector<8x128xf32>
    %39 = arith.subf %22, %38 : vector<8x128xf32>
    %cst_22 = arith.constant 9.99999974E-6 : f32
    %40 = vector.broadcast %cst_22 : f32 to vector<8x1xf32>
    %41 = arith.addf %37, %40 : vector<8x1xf32>
    %42 = math.rsqrt %41 : vector<8x1xf32>
    %43 = vector.broadcast %42 : vector<8x1xf32> to vector<8x128xf32>
    %44 = arith.mulf %39, %43 : vector<8x128xf32>
    %45 = vector.broadcast %23 : vector<1x128xf32> to vector<8x128xf32>
    %46 = arith.mulf %44, %45 : vector<8x128xf32>
    %47 = vector.broadcast %24 : vector<1x128xf32> to vector<8x128xf32>
    %48 = arith.addf %46, %47 : vector<8x128xf32>
    %cst_23 = arith.constant 0.000000e+00 : f32
    %49 = vector.broadcast %cst_23 : f32 to vector<8x128xf32>
    %50 = arith.maximumf %48, %49 : vector<8x128xf32>
    %51 = arith.truncf %50 : vector<8x128xf32> to vector<8x128xbf16>
    %c0_24 = arith.constant 0 : index
    %c0_25 = arith.constant 0 : index
    %52 = vector.load %arg10[%c0_24, %c0_25] : memref<128x128xbf16, #tpu.memory_space<vmem>>, vector<128x128xbf16>
    %cst_26 = arith.constant dense<0.000000e+00> : vector<8x128xf32>
    %53 = tpu.matmul %51, %52, %cst_26 {dimension_numbers = #tpu.dot_dimension_numbers<[1], [0], [0], [1], [0, 0, 1, 1], [], []>} : vector<8x128xbf16>, vector<128x128xbf16>, vector<8x128xf32> -> vector<8x128xf32>
    %c0_27 = arith.constant 0 : index
    %c0_28 = arith.constant 0 : index
    %54 = vector.load %arg11[%c0_27, %c0_28] : memref<1x128xf32, #tpu.memory_space<vmem>>, vector<1x128xf32>
    %55 = vector.broadcast %54 : vector<1x128xf32> to vector<8x128xf32>
    %56 = arith.addf %53, %55 : vector<8x128xf32>
    %c0_29 = arith.constant 0 : index
    %c0_30 = arith.constant 0 : index
    %57 = vector.load %arg12[%c0_29, %c0_30] : memref<1x128xf32, #tpu.memory_space<vmem>>, vector<1x128xf32>
    %c0_31 = arith.constant 0 : index
    %c0_32 = arith.constant 0 : index
    %58 = vector.load %arg13[%c0_31, %c0_32] : memref<1x128xf32, #tpu.memory_space<vmem>>, vector<1x128xf32>
    %cst_33 = arith.constant dense<0.000000e+00> : vector<8xf32>
    %59 = vector.multi_reduction <add>, %56, %cst_33 [1] : vector<8x128xf32> to vector<8xf32>
    %60 = vector.shape_cast %59 : vector<8xf32> to vector<8x1xf32>
    %cst_34 = arith.constant 3.125000e-02 : f32
    %61 = vector.broadcast %cst_34 : f32 to vector<8x1xf32>
    %62 = arith.mulf %60, %61 : vector<8x1xf32>
    %63 = arith.mulf %56, %56 : vector<8x128xf32>
    %cst_35 = arith.constant dense<0.000000e+00> : vector<8xf32>
    %64 = vector.multi_reduction <add>, %63, %cst_35 [1] : vector<8x128xf32> to vector<8xf32>
    %65 = vector.shape_cast %64 : vector<8xf32> to vector<8x1xf32>
    %cst_36 = arith.constant 3.125000e-02 : f32
    %66 = vector.broadcast %cst_36 : f32 to vector<8x1xf32>
    %67 = arith.mulf %65, %66 : vector<8x1xf32>
    %68 = arith.mulf %62, %62 : vector<8x1xf32>
    %69 = arith.subf %67, %68 : vector<8x1xf32>
    %cst_37 = arith.constant 0.000000e+00 : f32
    %70 = vector.broadcast %cst_37 : f32 to vector<8x1xf32>
    %71 = arith.maximumf %69, %70 : vector<8x1xf32>
    %72 = vector.broadcast %62 : vector<8x1xf32> to vector<8x128xf32>
    %73 = arith.subf %56, %72 : vector<8x128xf32>
    %cst_38 = arith.constant 9.99999974E-6 : f32
    %74 = vector.broadcast %cst_38 : f32 to vector<8x1xf32>
    %75 = arith.addf %71, %74 : vector<8x1xf32>
    %76 = math.rsqrt %75 : vector<8x1xf32>
    %77 = vector.broadcast %76 : vector<8x1xf32> to vector<8x128xf32>
    %78 = arith.mulf %73, %77 : vector<8x128xf32>
    %79 = vector.broadcast %57 : vector<1x128xf32> to vector<8x128xf32>
    %80 = arith.mulf %78, %79 : vector<8x128xf32>
    %81 = vector.broadcast %58 : vector<1x128xf32> to vector<8x128xf32>
    %82 = arith.addf %80, %81 : vector<8x128xf32>
    %cst_39 = arith.constant 0.000000e+00 : f32
    %83 = vector.broadcast %cst_39 : f32 to vector<8x128xf32>
    %84 = arith.maximumf %82, %83 : vector<8x128xf32>
    %85 = arith.truncf %84 : vector<8x128xf32> to vector<8x128xbf16>
    %c0_40 = arith.constant 0 : index
    %c0_41 = arith.constant 0 : index
    %86 = vector.load %arg14[%c0_40, %c0_41] : memref<128x32xbf16, #tpu.memory_space<vmem>>, vector<128x32xbf16>
    %cst_42 = arith.constant dense<0.000000e+00> : vector<8x32xf32>
    %87 = tpu.matmul %85, %86, %cst_42 {dimension_numbers = #tpu.dot_dimension_numbers<[1], [0], [0], [1], [0, 0, 1, 1], [], []>} : vector<8x128xbf16>, vector<128x32xbf16>, vector<8x32xf32> -> vector<8x32xf32>
    %c0_43 = arith.constant 0 : index
    %c0_44 = arith.constant 0 : index
    %88 = vector.load %arg15[%c0_43, %c0_44] : memref<1x32xf32, #tpu.memory_space<vmem>>, vector<1x32xf32>
    %89 = vector.broadcast %88 : vector<1x32xf32> to vector<8x32xf32>
    %90 = arith.addf %87, %89 : vector<8x32xf32>
    %c0_45 = arith.constant 0 : index
    %c0_46 = arith.constant 0 : index
    %c0_47 = arith.constant 0 : index
    %91 = vector.load %arg17[%c0_45, %c0_46, %c0_47] : memref<1x8x32xf32, #tpu.memory_space<vmem>>, vector<1x8x32xf32>
    %92 = vector.shape_cast %91 : vector<1x8x32xf32> to vector<8x32xf32>
    %93 = vector.shape_cast %90 : vector<8x32xf32> to vector<1x8x32xf32>
    tpu.vector_store %arg17[%c0_45, %c0_46, %c0_47], %93 {strides = array<i32>} : memref<1x8x32xf32, #tpu.memory_space<vmem>>, vector<1x8x32xf32>,
    return
  }
  func.func @transform_0(%arg0: i32, %arg1: i32) -> i32 {
    %c0_i32 = arith.constant 0 : i32
    %c0_i32_0 = arith.constant 0 : i32
    return %c0_i32 : i32
  }
  func.func @transform_1(%arg0: i32, %arg1: i32) -> i32 {
    %c0_i32 = arith.constant 0 : i32
    %c0_i32_0 = arith.constant 0 : i32
    return %c0_i32 : i32
  }
  func.func @transform_2(%arg0: i32, %arg1: i32) -> (i32, i32, i32) {
    %c0_i32 = arith.constant 0 : i32
    %c0_i32_0 = arith.constant 0 : i32
    %c0_i32_1 = arith.constant 0 : i32
    return %arg0, %c0_i32, %c0_i32_0 : i32, i32, i32
  }
  func.func @transform_3(%arg0: i32, %arg1: i32) -> (i32, i32, i32) {
    %c0_i32 = arith.constant 0 : i32
    %c0_i32_0 = arith.constant 0 : i32
    return %arg0, %arg1, %c0_i32 : i32, i32, i32
  }
  func.func @transform_4(%arg0: i32, %arg1: i32) -> (i32, i32, i32) {
    %c0_i32 = arith.constant 0 : i32
    %c0_i32_0 = arith.constant 0 : i32
    return %arg0, %arg1, %c0_i32 : i32, i32, i32
  }
  func.func @transform_5(%arg0: i32, %arg1: i32) -> (i32, i32) {
    %c0_i32 = arith.constant 0 : i32
    %c0_i32_0 = arith.constant 0 : i32
    %c0_i32_1 = arith.constant 0 : i32
    return %c0_i32, %c0_i32_0 : i32, i32
  }
  func.func @transform_6(%arg0: i32, %arg1: i32) -> (i32, i32) {
    %c0_i32 = arith.constant 0 : i32
    %c0_i32_0 = arith.constant 0 : i32
    %c0_i32_1 = arith.constant 0 : i32
    return %c0_i32, %c0_i32_0 : i32, i32
  }
  func.func @transform_7(%arg0: i32, %arg1: i32) -> (i32, i32) {
    %c0_i32 = arith.constant 0 : i32
    %c0_i32_0 = arith.constant 0 : i32
    %c0_i32_1 = arith.constant 0 : i32
    return %c0_i32, %c0_i32_0 : i32, i32
  }
  func.func @transform_8(%arg0: i32, %arg1: i32) -> (i32, i32) {
    %c0_i32 = arith.constant 0 : i32
    %c0_i32_0 = arith.constant 0 : i32
    %c0_i32_1 = arith.constant 0 : i32
    return %c0_i32, %c0_i32_0 : i32, i32
  }
  func.func @transform_9(%arg0: i32, %arg1: i32) -> (i32, i32) {
    %c0_i32 = arith.constant 0 : i32
    %c0_i32_0 = arith.constant 0 : i32
    %c0_i32_1 = arith.constant 0 : i32
    return %c0_i32, %c0_i32_0 : i32, i32
  }
  func.func @transform_10(%arg0: i32, %arg1: i32) -> (i32, i32) {
    %c0_i32 = arith.constant 0 : i32
    %c0_i32_0 = arith.constant 0 : i32
    %c0_i32_1 = arith.constant 0 : i32
    return %c0_i32, %c0_i32_0 : i32, i32
  }
  func.func @transform_11(%arg0: i32, %arg1: i32) -> (i32, i32) {
    %c0_i32 = arith.constant 0 : i32
    %c0_i32_0 = arith.constant 0 : i32
    %c0_i32_1 = arith.constant 0 : i32
    return %c0_i32, %c0_i32_0 : i32, i32
  }
  func.func @transform_12(%arg0: i32, %arg1: i32) -> (i32, i32) {
    %c0_i32 = arith.constant 0 : i32
    %c0_i32_0 = arith.constant 0 : i32
    %c0_i32_1 = arith.constant 0 : i32
    return %c0_i32, %c0_i32_0 : i32, i32
  }
  func.func @transform_13(%arg0: i32, %arg1: i32) -> (i32, i32) {
    %c0_i32 = arith.constant 0 : i32
    %c0_i32_0 = arith.constant 0 : i32
    %c0_i32_1 = arith.constant 0 : i32
    return %c0_i32, %c0_i32_0 : i32, i32
  }
  func.func @transform_14(%arg0: i32, %arg1: i32) -> (i32, i32, i32) {
    %c0_i32 = arith.constant 0 : i32
    %c0_i32_0 = arith.constant 0 : i32
    return %arg0, %arg1, %c0_i32 : i32, i32, i32
  }
  func.func @transform_15(%arg0: i32, %arg1: i32) -> (i32, i32, i32) {
    %c0_i32 = arith.constant 0 : i32
    %c0_i32_0 = arith.constant 0 : i32
    return %arg0, %arg1, %c0_i32 : i32, i32, i32
  }
}

</mosaic_0001>

<llo_original>
// kernel: _noise_pred_forward.1
$region0: #{_noise_pred_forward.1}
  #allocation0 [shape = 'u32[]', space=smem, size = 0x4, offset = 0x4, fixed_abs, tag = 'smem constant byte address 0x4 - core index']
  #allocation1 [shape = 'u32[144,128]{1,0:T(1,128)}', space=vmem, size = 0x12000, scoped, tag = 'internal scratch']
  %s0 = inlined_call_operand.vmem [shape: f32[2], index: 0, kind: input, shape index: {}]
  %s1 = inlined_call_operand.vmem [shape: f32[2], index: 1, kind: input, shape index: {}]
  %s2 = inlined_call_operand.vmem [shape: f32[2,1,128], index: 2, kind: input, shape index: {}]
  %s3 = inlined_call_operand.vmem [shape: f32[2,8,32], index: 3, kind: input, shape index: {}]
  %s4 = inlined_call_operand.hbm [shape: f32[2,8,32], index: 4, kind: input, shape index: {}]
  %s5 = inlined_call_operand.hbm [shape: bf16[32,128], index: 5, kind: input, shape index: {}]
  %s6 = inlined_call_operand.vmem [shape: f32[1,128], index: 6, kind: input, shape index: {}]
  %s7 = inlined_call_operand.hbm [shape: f32[1,128], index: 7, kind: input, shape index: {}]
  %s8 = inlined_call_operand.vmem [shape: bf16[128,128], index: 8, kind: input, shape index: {}]
  %s9 = inlined_call_operand.hbm [shape: f32[1,128], index: 9, kind: input, shape index: {}]
  %s10 = inlined_call_operand.hbm [shape: f32[1,128], index: 10, kind: input, shape index: {}]
  %s11 = inlined_call_operand.hbm [shape: f32[1,128], index: 11, kind: input, shape index: {}]
  %s12 = inlined_call_operand.vmem [shape: bf16[128,32], index: 12, kind: input, shape index: {}]
  %s13 = inlined_call_operand.vmem [shape: f32[1,32], index: 13, kind: input, shape index: {}]
  %s14 = inlined_call_operand.hbm [shape: f32[2,8,32], index: 14, kind: output, shape index: {0}]
  %s15 = inlined_call_operand.hbm [shape: f32[2,8,32], index: 15, kind: output, shape index: {1}]
  %16 = xla_tuple %s14, %s15
  %s17 = sld [smem:[#allocation0]]
  $region129: #{_noise_pred_forward.1} parent=0
    _
  %s19 = ssub.s32 1, %s17
  %s20 = scalar_select 0, %s19, %s17
  $region1: #{_noise_pred_forward.1} parent=0
    #allocation2 [shape = 'u8[512]{0}', space=smem, size = 0x200, scoped, tag = 'input window, operand 0, single buffered']
    #allocation3 [shape = 's32[2]{0}', space=sflag, size = 0x8, scoped, tag = 'scoped memory for _noise_pred_forward.1']
    #allocation4 [shape = 's32[2]{0}', space=sflag, size = 0x8, scoped, tag = 'scoped memory for _noise_pred_forward.1']
    #allocation5 [shape = 's32[2]{0}', space=sflag, size = 0x8, scoped, tag = 'scoped memory for _noise_pred_forward.1']
    #allocation6 [shape = 'u8[512]{0}', space=smem, size = 0x200, scoped, tag = 'input window, operand 1, single buffered']
    #allocation7 [shape = 's32[1]{0}', space=sflag, size = 0x4, scoped, tag = 'scoped memory for _noise_pred_forward.1']
    #allocation8 [shape = 'u8[8192]{0}', space=vmem, size = 0x2000, scoped, tag = 'input window, operand 4']
    #allocation9 [shape = 'u8[8192]{0}', space=vmem, size = 0x2000, scoped, tag = 'input window, operand 5, single buffered']
    #allocation10 [shape = 's32[1]{0}', space=sflag, size = 0x4, scoped, tag = 'scoped memory for _noise_pred_forward.1']
    #allocation11 [shape = 'u8[512]{0}', space=vmem, size = 0x400, scoped, tag = 'input window, operand 7, single buffered']
    #allocation12 [shape = 'u8[512]{0}', space=vmem, size = 0x400, scoped, tag = 'input window, operand 9, single buffered']
    #allocation13 [shape = 's32[1]{0}', space=sflag, size = 0x4, scoped, tag = 'scoped memory for _noise_pred_forward.1']
    #allocation14 [shape = 'u8[512]{0}', space=vmem, size = 0x400, scoped, tag = 'input window, operand 10, single buffered']
    #allocation15 [shape = 'u8[512]{0}', space=vmem, size = 0x400, scoped, tag = 'input window, operand 11, single buffered']
    #allocation16 [shape = 's32[1]{0}', space=sflag, size = 0x4, scoped, tag = 'scoped memory for _noise_pred_forward.1']
    #allocation17 [shape = 'u8[8192]{0}', space=vmem, size = 0x2000, scoped, tag = 'output window, operand 0']
    #allocation18 [shape = 'u8[8192]{0}', space=vmem, size = 0x2000, scoped, tag = 'output window, operand 1']
    #allocation19 [shape = 's32[2]{0}', space=sflag, size = 0x8, scoped, tag = 'scoped memory for _noise_pred_forward.1']
    %21 = vsyncpa [#allocation5], 0
    %22 = vsyncpa [#allocation7], 0
    %23 = vsyncpa [#allocation3], 0
    %s24 = scalar_lea.sflag [#allocation3], 1
    %25 = vsyncpa %s24, 0
    %26 = vsyncpa [#allocation10], 0
    %27 = vsyncpa [#allocation13], 0
    %28 = vsyncpa [#allocation16], 0
    %29 = vsyncpa [#allocation4], 0
    %s30 = scalar_lea.sflag [#allocation4], 1
    %31 = vsyncpa %s30, 0
    %32 = vsyncpa [#allocation19], 0
    %s33 = scalar_lea.sflag [#allocation19], 1
    %34 = vsyncpa %s33, 0
    loop: start=0, step=1, limit=4
    $region2: #{_noise_pred_forward.1} parent=1 // loop_pre_header
      _
    $region3: #{_noise_pred_forward.1} parent=1 // loop_header
      %s36 = sphi 0, %s40
      %p37 = scmp.ge.s32.totalorder %s36, 4
      %s43 = sphi 0, %s55
      %s44 = sphi 0, %s51
      %s45 = sphi 0, %s43
      %s46 = sphi 0, %s44
      %s47 = sphi 0, %s45
      %s48 = sphi 0, %s46
      %s56 = sphi 0, %s56
      %s58 = sphi 0, %s56
      %s59 = sphi 0, %s58
      %s73 = sphi 0, %s59
      %s77 = sphi 0, %s77
      %s79 = sphi 0, %s77
      %s80 = sphi 0, %s79
      %s94 = sphi 0, %s80
      %s100 = sphi 0, %s102
      %s103 = sphi 0, %s100
      %s104 = sphi 0, %s103
      %s120 = sphi 0, %s104
      %s128 = sphi 0, %s130
      %s131 = sphi 0, %s128
      %s132 = sphi 0, %s131
      %s148 = sphi 0, %s132
      %s156 = sphi 0, %s158
      %s159 = sphi 0, %s156
      %s160 = sphi 0, %s159
      %s176 = sphi 0, %s160
      %s180 = sphi 0, %s180
      %s182 = sphi 0, %s180
      %s183 = sphi 0, %s182
      %s197 = sphi 0, %s183
      %s201 = sphi 0, %s201
      %s203 = sphi 0, %s201
      %s204 = sphi 0, %s203
      %s218 = sphi 0, %s204
      %s222 = sphi 0, %s222
      %s224 = sphi 0, %s222
      %s225 = sphi 0, %s224
      %s239 = sphi 0, %s225
      %s243 = sphi 0, %s243
      %s245 = sphi 0, %s243
      %s246 = sphi 0, %s245
      %s260 = sphi 0, %s246
      %s264 = sphi 0, %s264
      %s266 = sphi 0, %s264
      %s267 = sphi 0, %s266
      %s281 = sphi 0, %s267
      %s285 = sphi 0, %s285
      %s287 = sphi 0, %s285
      %s288 = sphi 0, %s287
      %s302 = sphi 0, %s288
      %s306 = sphi 0, %s306
      %s308 = sphi 0, %s306
      %s309 = sphi 0, %s308
      %s323 = sphi 0, %s309
      %s327 = sphi 0, %s327
      %s329 = sphi 0, %s327
      %s330 = sphi 0, %s329
      %s344 = sphi 0, %s330
      %s348 = sphi 0, %s348
      %s350 = sphi 0, %s348
      %s351 = sphi 0, %s350
      %s365 = sphi 0, %s351
      %s373 = sphi 0, %s375
      %s376 = sphi 0, %s373
      %s377 = sphi 0, %s376
      %s393 = sphi 0, %s377
      %s401 = sphi 0, %s403
      %s404 = sphi 0, %s401
      %s405 = sphi 0, %s404
      %s421 = sphi 0, %s405
    $region4: #{_noise_pred_forward.1} parent=1 // loop_header_branch
      %39 = sbr.rel (%p37) target = $region8
    $region5: #{_noise_pred_forward.1} parent=1 // loop_body
      %s41 = ssub.s32 %s36, 1
      %s42 = ssub.s32 %s36, 2
      %s49 = sadd.s32 1, %s44
      %p50 = scmp.ge.s32.totalorder %s49, 1
      %s51 = scalar_select %p50, 0, %s49
      %s52 = sadd.s32 1, %s43
      %s53 = scalar_select %p50, %s52, %s43
      %p54 = scmp.ge.s32.totalorder %s53, 2
      %s55 = scalar_select %p54, 0, %s53
      %s57 = sadd.s32 %s56, 1
      %p60 = scmp.eq.s32.totalorder %s36, 1
      %p61 = scmp.ne.s32.totalorder %s56, %s58
      %p62 = scmp.eq.s32.totalorder %s36, 0
      %p63 = por %p61, %p62
      %p64 = scmp.ne.s32.totalorder %s56, %s58
      %p65 = scmp.eq.s32.totalorder %s41, 1
      %p66 = por %p64, %p65
      %p67 = scmp.ne.s32.totalorder %s58, %s59
      %p68 = scmp.eq.s32.totalorder %s41, 0
      %p69 = por %p67, %p68
      %p70 = scmp.ne.s32.totalorder %s58, %s59
      %p71 = scmp.eq.s32.totalorder %s42, 1
      %p72 = por %p70, %p71
      %p74 = scmp.ne.s32.totalorder %s59, %s73
      %p75 = scmp.eq.s32.totalorder %s42, 0
      %p76 = por %p74, %p75
      %s78 = sadd.s32 %s77, 1
      %p81 = scmp.eq.s32.totalorder %s36, 1
      %p82 = scmp.ne.s32.totalorder %s77, %s79
      %p83 = scmp.eq.s32.totalorder %s36, 0
      %p84 = por %p82, %p83
      %p85 = scmp.ne.s32.totalorder %s77, %s79
      %p86 = scmp.eq.s32.totalorder %s41, 1
      %p87 = por %p85, %p86
      %p88 = scmp.ne.s32.totalorder %s79, %s80
      %p89 = scmp.eq.s32.totalorder %s41, 0
      %p90 = por %p88, %p89
      %p91 = scmp.ne.s32.totalorder %s79, %s80
      %p92 = scmp.eq.s32.totalorder %s42, 1
      %p93 = por %p91, %p92
      %p95 = scmp.ne.s32.totalorder %s80, %s94
      %p96 = scmp.eq.s32.totalorder %s42, 0
      %p97 = por %p95, %p96
      %s98 = ssub.s32 %s43, %s55
      %p99 = scmp.eq.s32.totalorder %s98, 0
      %s101 = sadd.s32 %s100, 1
      %s102 = scalar_select %p99, %s100, %s101
      %p105 = pneg %p99
      %p106 = scmp.eq.s32.totalorder %s36, 1
      %p107 = por %p105, %p106
      %p108 = scmp.ne.s32.totalorder %s100, %s103
      %p109 = scmp.eq.s32.totalorder %s36, 0
      %p110 = por %p108, %p109
      %p111 = scmp.ne.s32.totalorder %s100, %s103
      %p112 = scmp.eq.s32.totalorder %s41, 1
      %p113 = por %p111, %p112
      %p114 = scmp.ne.s32.totalorder %s103, %s104
      %p115 = scmp.eq.s32.totalorder %s41, 0
      %p116 = por %p114, %p115
      %p117 = scmp.ne.s32.totalorder %s103, %s104
      %p118 = scmp.eq.s32.totalorder %s42, 1
      %p119 = por %p117, %p118
      %p121 = scmp.ne.s32.totalorder %s104, %s120
      %p122 = scmp.eq.s32.totalorder %s42, 0
      %p123 = por %p121, %p122
      %s124 = ssub.s32 %s43, %s55
      %s125 = ssub.s32 %s44, %s51
      %s126 = sor.u32 %s124, %s125
      %p127 = scmp.eq.s32.totalorder %s126, 0
      %s129 = sadd.s32 %s128, 1
      %s130 = scalar_select %p127, %s128, %s129
      %p133 = pneg %p127
      %p134 = scmp.eq.s32.totalorder %s36, 1
      %p135 = por %p133, %p134
      %p136 = scmp.ne.s32.totalorder %s128, %s131
      %p137 = scmp.eq.s32.totalorder %s36, 0
      %p138 = por %p136, %p137
      %p139 = scmp.ne.s32.totalorder %s128, %s131
      %p140 = scmp.eq.s32.totalorder %s41, 1
      %p141 = por %p139, %p140
      %p142 = scmp.ne.s32.totalorder %s131, %s132
      %p143 = scmp.eq.s32.totalorder %s41, 0
      %p144 = por %p142, %p143
      %p145 = scmp.ne.s32.totalorder %s131, %s132
      %p146 = scmp.eq.s32.totalorder %s42, 1
      %p147 = por %p145, %p146
      %p149 = scmp.ne.s32.totalorder %s132, %s148
      %p150 = scmp.eq.s32.totalorder %s42, 0
      %p151 = por %p149, %p150
      %s152 = ssub.s32 %s43, %s55
      %s153 = ssub.s32 %s44, %s51
      %s154 = sor.u32 %s152, %s153
      %p155 = scmp.eq.s32.totalorder %s154, 0
      %s157 = sadd.s32 %s156, 1
      %s158 = scalar_select %p155, %s156, %s157
      %p161 = pneg %p155
      %p162 = scmp.eq.s32.totalorder %s36, 1
      %p163 = por %p161, %p162
      %p164 = scmp.ne.s32.totalorder %s156, %s159
      %p165 = scmp.eq.s32.totalorder %s36, 0
      %p166 = por %p164, %p165
      %p167 = scmp.ne.s32.totalorder %s156, %s159
      %p168 = scmp.eq.s32.totalorder %s41, 1
      %p169 = por %p167, %p168
      %p170 = scmp.ne.s32.totalorder %s159, %s160
      %p171 = scmp.eq.s32.totalorder %s41, 0
      %p172 = por %p170, %p171
      %p173 = scmp.ne.s32.totalorder %s159, %s160
      %p174 = scmp.eq.s32.totalorder %s42, 1
      %p175 = por %p173, %p174
      %p177 = scmp.ne.s32.totalorder %s160, %s176
      %p178 = scmp.eq.s32.totalorder %s42, 0
      %p179 = por %p177, %p178
      %s181 = sadd.s32 %s180, 1
      %p184 = scmp.eq.s32.totalorder %s36, 1
      %p185 = scmp.ne.s32.totalorder %s180, %s182
      %p186 = scmp.eq.s32.totalorder %s36, 0
      %p187 = por %p185, %p186
      %p188 = scmp.ne.s32.totalorder %s180, %s182
      %p189 = scmp.eq.s32.totalorder %s41, 1
      %p190 = por %p188, %p189
      %p191 = scmp.ne.s32.totalorder %s182, %s183
      %p192 = scmp.eq.s32.totalorder %s41, 0
      %p193 = por %p191, %p192
      %p194 = scmp.ne.s32.totalorder %s182, %s183
      %p195 = scmp.eq.s32.totalorder %s42, 1
      %p196 = por %p194, %p195
      %p198 = scmp.ne.s32.totalorder %s183, %s197
      %p199 = scmp.eq.s32.totalorder %s42, 0
      %p200 = por %p198, %p199
      %s202 = sadd.s32 %s201, 1
      %p205 = scmp.eq.s32.totalorder %s36, 1
      %p206 = scmp.ne.s32.totalorder %s201, %s203
      %p207 = scmp.eq.s32.totalorder %s36, 0
      %p208 = por %p206, %p207
      %p209 = scmp.ne.s32.totalorder %s201, %s203
      %p210 = scmp.eq.s32.totalorder %s41, 1
      %p211 = por %p209, %p210
      %p212 = scmp.ne.s32.totalorder %s203, %s204
      %p213 = scmp.eq.s32.totalorder %s41, 0
      %p214 = por %p212, %p213
      %p215 = scmp.ne.s32.totalorder %s203, %s204
      %p216 = scmp.eq.s32.totalorder %s42, 1
      %p217 = por %p215, %p216
      %p219 = scmp.ne.s32.totalorder %s204, %s218
      %p220 = scmp.eq.s32.totalorder %s42, 0
      %p221 = por %p219, %p220
      %s223 = sadd.s32 %s222, 1
      %p226 = scmp.eq.s32.totalorder %s36, 1
      %p227 = scmp.ne.s32.totalorder %s222, %s224
      %p228 = scmp.eq.s32.totalorder %s36, 0
      %p229 = por %p227, %p228
      %p230 = scmp.ne.s32.totalorder %s222, %s224
      %p231 = scmp.eq.s32.totalorder %s41, 1
      %p232 = por %p230, %p231
      %p233 = scmp.ne.s32.totalorder %s224, %s225
      %p234 = scmp.eq.s32.totalorder %s41, 0
      %p235 = por %p233, %p234
      %p236 = scmp.ne.s32.totalorder %s224, %s225
      %p237 = scmp.eq.s32.totalorder %s42, 1
      %p238 = por %p236, %p237
      %p240 = scmp.ne.s32.totalorder %s225, %s239
      %p241 = scmp.eq.s32.totalorder %s42, 0
      %p242 = por %p240, %p241
      %s244 = sadd.s32 %s243, 1
      %p247 = scmp.eq.s32.totalorder %s36, 1
      %p248 = scmp.ne.s32.totalorder %s243, %s245
      %p249 = scmp.eq.s32.totalorder %s36, 0
      %p250 = por %p248, %p249
      %p251 = scmp.ne.s32.totalorder %s243, %s245
      %p252 = scmp.eq.s32.totalorder %s41, 1
      %p253 = por %p251, %p252
      %p254 = scmp.ne.s32.totalorder %s245, %s246
      %p255 = scmp.eq.s32.totalorder %s41, 0
      %p256 = por %p254, %p255
      %p257 = scmp.ne.s32.totalorder %s245, %s246
      %p258 = scmp.eq.s32.totalorder %s42, 1
      %p259 = por %p257, %p258
      %p261 = scmp.ne.s32.totalorder %s246, %s260
      %p262 = scmp.eq.s32.totalorder %s42, 0
      %p263 = por %p261, %p262
      %s265 = sadd.s32 %s264, 1
      %p268 = scmp.eq.s32.totalorder %s36, 1
      %p269 = scmp.ne.s32.totalorder %s264, %s266
      %p270 = scmp.eq.s32.totalorder %s36, 0
      %p271 = por %p269, %p270
      %p272 = scmp.ne.s32.totalorder %s264, %s266
      %p273 = scmp.eq.s32.totalorder %s41, 1
      %p274 = por %p272, %p273
      %p275 = scmp.ne.s32.totalorder %s266, %s267
      %p276 = scmp.eq.s32.totalorder %s41, 0
      %p277 = por %p275, %p276
      %p278 = scmp.ne.s32.totalorder %s266, %s267
      %p279 = scmp.eq.s32.totalorder %s42, 1
      %p280 = por %p278, %p279
      %p282 = scmp.ne.s32.totalorder %s267, %s281
      %p283 = scmp.eq.s32.totalorder %s42, 0
      %p284 = por %p282, %p283
      %s286 = sadd.s32 %s285, 1
      %p289 = scmp.eq.s32.totalorder %s36, 1
      %p290 = scmp.ne.s32.totalorder %s285, %s287
      %p291 = scmp.eq.s32.totalorder %s36, 0
      %p292 = por %p290, %p291
      %p293 = scmp.ne.s32.totalorder %s285, %s287
      %p294 = scmp.eq.s32.totalorder %s41, 1
      %p295 = por %p293, %p294
      %p296 = scmp.ne.s32.totalorder %s287, %s288
      %p297 = scmp.eq.s32.totalorder %s41, 0
      %p298 = por %p296, %p297
      %p299 = scmp.ne.s32.totalorder %s287, %s288
      %p300 = scmp.eq.s32.totalorder %s42, 1
      %p301 = por %p299, %p300
      %p303 = scmp.ne.s32.totalorder %s288, %s302
      %p304 = scmp.eq.s32.totalorder %s42, 0
      %p305 = por %p303, %p304
      %s307 = sadd.s32 %s306, 1
      %p310 = scmp.eq.s32.totalorder %s36, 1
      %p311 = scmp.ne.s32.totalorder %s306, %s308
      %p312 = scmp.eq.s32.totalorder %s36, 0
      %p313 = por %p311, %p312
      %p314 = scmp.ne.s32.totalorder %s306, %s308
      %p315 = scmp.eq.s32.totalorder %s41, 1
      %p316 = por %p314, %p315
      %p317 = scmp.ne.s32.totalorder %s308, %s309
      %p318 = scmp.eq.s32.totalorder %s41, 0
      %p319 = por %p317, %p318
      %p320 = scmp.ne.s32.totalorder %s308, %s309
      %p321 = scmp.eq.s32.totalorder %s42, 1
      %p322 = por %p320, %p321
      %p324 = scmp.ne.s32.totalorder %s309, %s323
      %p325 = scmp.eq.s32.totalorder %s42, 0
      %p326 = por %p324, %p325
      %s328 = sadd.s32 %s327, 1
      %p331 = scmp.eq.s32.totalorder %s36, 1
      %p332 = scmp.ne.s32.totalorder %s327, %s329
      %p333 = scmp.eq.s32.totalorder %s36, 0
      %p334 = por %p332, %p333
      %p335 = scmp.ne.s32.totalorder %s327, %s329
      %p336 = scmp.eq.s32.totalorder %s41, 1
      %p337 = por %p335, %p336
      %p338 = scmp.ne.s32.totalorder %s329, %s330
      %p339 = scmp.eq.s32.totalorder %s41, 0
      %p340 = por %p338, %p339
      %p341 = scmp.ne.s32.totalorder %s329, %s330
      %p342 = scmp.eq.s32.totalorder %s42, 1
      %p343 = por %p341, %p342
      %p345 = scmp.ne.s32.totalorder %s330, %s344
      %p346 = scmp.eq.s32.totalorder %s42, 0
      %p347 = por %p345, %p346
      %s349 = sadd.s32 %s348, 1
      %p352 = scmp.eq.s32.totalorder %s36, 1
      %p353 = scmp.ne.s32.totalorder %s348, %s350
      %p354 = scmp.eq.s32.totalorder %s36, 0
      %p355 = por %p353, %p354
      %p356 = scmp.ne.s32.totalorder %s348, %s350
      %p357 = scmp.eq.s32.totalorder %s41, 1
      %p358 = por %p356, %p357
      %p359 = scmp.ne.s32.totalorder %s350, %s351
      %p360 = scmp.eq.s32.totalorder %s41, 0
      %p361 = por %p359, %p360
      %p362 = scmp.ne.s32.totalorder %s350, %s351
      %p363 = scmp.eq.s32.totalorder %s42, 1
      %p364 = por %p362, %p363
      %p366 = scmp.ne.s32.totalorder %s351, %s365
      %p367 = scmp.eq.s32.totalorder %s42, 0
      %p368 = por %p366, %p367
      %s369 = ssub.s32 %s43, %s55
      %s370 = ssub.s32 %s44, %s51
      %s371 = sor.u32 %s369, %s370
      %p372 = scmp.eq.s32.totalorder %s371, 0
      %s374 = sadd.s32 %s373, 1
      %s375 = scalar_select %p372, %s373, %s374
      %p378 = pneg %p372
      %p379 = scmp.eq.s32.totalorder %s36, 1
      %p380 = por %p378, %p379
      %p381 = scmp.ne.s32.totalorder %s373, %s376
      %p382 = scmp.eq.s32.totalorder %s36, 0
      %p383 = por %p381, %p382
      %p384 = scmp.ne.s32.totalorder %s373, %s376
      %p385 = scmp.eq.s32.totalorder %s41, 1
      %p386 = por %p384, %p385
      %p387 = scmp.ne.s32.totalorder %s376, %s377
      %p388 = scmp.eq.s32.totalorder %s41, 0
      %p389 = por %p387, %p388
      %p390 = scmp.ne.s32.totalorder %s376, %s377
      %p391 = scmp.eq.s32.totalorder %s42, 1
      %p392 = por %p390, %p391
      %p394 = scmp.ne.s32.totalorder %s377, %s393
      %p395 = scmp.eq.s32.totalorder %s42, 0
      %p396 = por %p394, %p395
      %s397 = ssub.s32 %s43, %s55
      %s398 = ssub.s32 %s44, %s51
      %s399 = sor.u32 %s397, %s398
      %p400 = scmp.eq.s32.totalorder %s399, 0
      %s402 = sadd.s32 %s401, 1
      %s403 = scalar_select %p400, %s401, %s402
      %p406 = pneg %p400
      %p407 = scmp.eq.s32.totalorder %s36, 1
      %p408 = por %p406, %p407
      %p409 = scmp.ne.s32.totalorder %s401, %s404
      %p410 = scmp.eq.s32.totalorder %s36, 0
      %p411 = por %p409, %p410
      %p412 = scmp.ne.s32.totalorder %s401, %s404
      %p413 = scmp.eq.s32.totalorder %s41, 1
      %p414 = por %p412, %p413
      %p415 = scmp.ne.s32.totalorder %s404, %s405
      %p416 = scmp.eq.s32.totalorder %s41, 0
      %p417 = por %p415, %p416
      %p418 = scmp.ne.s32.totalorder %s404, %s405
      %p419 = scmp.eq.s32.totalorder %s42, 1
      %p420 = por %p418, %p419
      %p422 = scmp.ne.s32.totalorder %s405, %s421
      %p423 = scmp.eq.s32.totalorder %s42, 0
      %p424 = por %p422, %p423
      %p425 = scmp.le.s32.totalorder 1, %s36
      %p426 = scmp.lt.s32.totalorder %s36, 3
      %p427 = pnand %p425, %p426
      %p428 = pneg %p427
      // Predicated region
      $region9: #{_noise_pred_forward.1} parent=5 // pred_check
        _
      $region10: #{_noise_pred_forward.1} parent=5 // pred_check_branch
        %430 = sbr.rel (%p427) target = $region12
      $region11: #{_noise_pred_forward.1} parent=5 // pred_region
        %s431 = ssub.s32 %s36, 1
        // Predicated region
        $region13: #{_noise_pred_forward.1} parent=11 // pred_check
          %p432 = pneg %p69
        $region14: #{_noise_pred_forward.1} parent=11 // pred_check_branch
          %434 = sbr.rel (%p432) target = $region16
        $region15: #{_noise_pred_forward.1} parent=11 // pred_region
          %s436 = ssub.s32 16, 16
          %437 = vsyncadd [#allocation5], %s436
          %s439 = sshll.u32 %s0, 4
          %s440 = int_to_ptr.vmem [resolvable:$true] %s439
          %442 = dma.vmem_to_smem %s440, 16, [#allocation2], [#allocation5]
        $region16: #{_noise_pred_forward.1} parent=11 // pred_fallthru
          _
        // Predicated region
        $region17: #{_noise_pred_forward.1} parent=11 // pred_check
          %p443 = pneg %p90
        $region18: #{_noise_pred_forward.1} parent=11 // pred_check_branch
          %445 = sbr.rel (%p443) target = $region20
        $region19: #{_noise_pred_forward.1} parent=11 // pred_region
          %s447 = ssub.s32 16, 16
          %448 = vsyncadd [#allocation7], %s447
          %s450 = sshll.u32 %s1, 4
          %s451 = int_to_ptr.vmem [resolvable:$true] %s450
          %453 = dma.vmem_to_smem %s451, 16, [#allocation6], [#allocation7]
        $region20: #{_noise_pred_forward.1} parent=11 // pred_fallthru
          _
        // Predicated region
        $region21: #{_noise_pred_forward.1} parent=11 // pred_check
          %p454 = pneg %p193
        $region22: #{_noise_pred_forward.1} parent=11 // pred_check_branch
          %456 = sbr.rel (%p454) target = $region24
        $region23: #{_noise_pred_forward.1} parent=11 // pred_region
          %s458 = ssub.s32 256, 256
          %459 = vsyncadd [#allocation10], %s458
          %s460 = sshll.u32 [#allocation9], 4
          %s461 = int_to_ptr.vmem [resolvable:$true] %s460
          %466 = dma.hbm_to_vmem [thread:$0]  %s5, 256, %s461, [#allocation10], 64, 64, 4
        $region24: #{_noise_pred_forward.1} parent=11 // pred_fallthru
          _
        // Predicated region
        $region25: #{_noise_pred_forward.1} parent=11 // pred_check
          %p467 = pneg %p214
        $region26: #{_noise_pred_forward.1} parent=11 // pred_check_branch
          %469 = sbr.rel (%p467) target = $region28
        $region27: #{_noise_pred_forward.1} parent=11 // pred_region
          _
        $region28: #{_noise_pred_forward.1} parent=11 // pred_fallthru
          _
        // Predicated region
        $region29: #{_noise_pred_forward.1} parent=11 // pred_check
          %p470 = pneg %p235
        $region30: #{_noise_pred_forward.1} parent=11 // pred_check_branch
          %472 = sbr.rel (%p470) target = $region32
        $region31: #{_noise_pred_forward.1} parent=11 // pred_region
          %s474 = ssub.s32 16, 16
          %475 = vsyncadd [#allocation10], %s474
          %s477 = sshll.u32 [#allocation11], 4
          %s478 = int_to_ptr.vmem [resolvable:$true] %s477
          %480 = dma.hbm_to_vmem [thread:$0]  %s7, 16, %s478, [#allocation10]
        $region32: #{_noise_pred_forward.1} parent=11 // pred_fallthru
          _
        // Predicated region
        $region33: #{_noise_pred_forward.1} parent=11 // pred_check
          %p481 = pneg %p256
        $region34: #{_noise_pred_forward.1} parent=11 // pred_check_branch
          %483 = sbr.rel (%p481) target = $region36
        $region35: #{_noise_pred_forward.1} parent=11 // pred_region
          _
        $region36: #{_noise_pred_forward.1} parent=11 // pred_fallthru
          _
        // Predicated region
        $region37: #{_noise_pred_forward.1} parent=11 // pred_check
          %p484 = pneg %p277
        $region38: #{_noise_pred_forward.1} parent=11 // pred_check_branch
          %486 = sbr.rel (%p484) target = $region40
        $region39: #{_noise_pred_forward.1} parent=11 // pred_region
          %s488 = ssub.s32 16, 16
          %489 = vsyncadd [#allocation13], %s488
          %s491 = sshll.u32 [#allocation12], 4
          %s492 = int_to_ptr.vmem [resolvable:$true] %s491
          %494 = dma.hbm_to_vmem [thread:$0]  %s9, 16, %s492, [#allocation13]
        $region40: #{_noise_pred_forward.1} parent=11 // pred_fallthru
          _
        // Predicated region
        $region41: #{_noise_pred_forward.1} parent=11 // pred_check
          %p495 = pneg %p298
        $region42: #{_noise_pred_forward.1} parent=11 // pred_check_branch
          %497 = sbr.rel (%p495) target = $region44
        $region43: #{_noise_pred_forward.1} parent=11 // pred_region
          %s499 = ssub.s32 16, 16
          %500 = vsyncadd [#allocation13], %s499
          %s502 = sshll.u32 [#allocation14], 4
          %s503 = int_to_ptr.vmem [resolvable:$true] %s502
          %505 = dma.hbm_to_vmem [thread:$0]  %s10, 16, %s503, [#allocation13]
        $region44: #{_noise_pred_forward.1} parent=11 // pred_fallthru
          _
        // Predicated region
        $region45: #{_noise_pred_forward.1} parent=11 // pred_check
          %p506 = pneg %p319
        $region46: #{_noise_pred_forward.1} parent=11 // pred_check_branch
          %508 = sbr.rel (%p506) target = $region48
        $region47: #{_noise_pred_forward.1} parent=11 // pred_region
          %s510 = ssub.s32 16, 16
          %511 = vsyncadd [#allocation16], %s510
          %s513 = sshll.u32 [#allocation15], 4
          %s514 = int_to_ptr.vmem [resolvable:$true] %s513
          %516 = dma.hbm_to_vmem [thread:$0]  %s11, 16, %s514, [#allocation16]
        $region48: #{_noise_pred_forward.1} parent=11 // pred_fallthru
          _
        // Predicated region
        $region49: #{_noise_pred_forward.1} parent=11 // pred_check
          %p517 = pneg %p340
        $region50: #{_noise_pred_forward.1} parent=11 // pred_check_branch
          %519 = sbr.rel (%p517) target = $region52
        $region51: #{_noise_pred_forward.1} parent=11 // pred_region
          _
        $region52: #{_noise_pred_forward.1} parent=11 // pred_fallthru
          _
        // Predicated region
        $region53: #{_noise_pred_forward.1} parent=11 // pred_check
          %p520 = pneg %p361
        $region54: #{_noise_pred_forward.1} parent=11 // pred_check_branch
          %522 = sbr.rel (%p520) target = $region56
        $region55: #{_noise_pred_forward.1} parent=11 // pred_region
          _
        $region56: #{_noise_pred_forward.1} parent=11 // pred_fallthru
          _
      $region12: #{_noise_pred_forward.1} parent=5 // pred_fallthru
        _
      %p523 = scmp.lt.s32.totalorder %s36, 2
      // Predicated region
      $region57: #{_noise_pred_forward.1} parent=5 // pred_check
        %p524 = pneg %p523
      $region58: #{_noise_pred_forward.1} parent=5 // pred_check_branch
        %526 = sbr.rel (%p524) target = $region60
      $region59: #{_noise_pred_forward.1} parent=5 // pred_region
        // Predicated region
        $region61: #{_noise_pred_forward.1} parent=59 // pred_check
          %p527 = pneg %p110
        $region62: #{_noise_pred_forward.1} parent=59 // pred_check_branch
          %529 = sbr.rel (%p527) target = $region64
        $region63: #{_noise_pred_forward.1} parent=59 // pred_region
          %p530 = scmp.lt.s32.totalorder %s43, 1
          %s531 = scalar_select %p530, %s43, 1
          %s532 = scalar_lea.vmem %s2, %s531
        $region64: #{_noise_pred_forward.1} parent=59 // pred_fallthru
          _
        // Predicated region
        $region65: #{_noise_pred_forward.1} parent=59 // pred_check
          %p533 = pneg %p138
        $region66: #{_noise_pred_forward.1} parent=59 // pred_check_branch
          %535 = sbr.rel (%p533) target = $region68
        $region67: #{_noise_pred_forward.1} parent=59 // pred_region
          %p536 = scmp.lt.s32.totalorder %s43, 1
          %s537 = scalar_select %p536, %s43, 1
          %p538 = scmp.lt.s32.totalorder %s44, 0
          %s539 = scalar_select %p538, %s44, 0
          %s540 = sadd.s32 %s539, %s537
          %s541 = smul.addr %s540, 8
          %s542 = scalar_lea.vmem %s3, %s541
        $region68: #{_noise_pred_forward.1} parent=59 // pred_fallthru
          _
        // Predicated region
        $region69: #{_noise_pred_forward.1} parent=59 // pred_check
          %p543 = pneg %p166
        $region70: #{_noise_pred_forward.1} parent=59 // pred_check_branch
          %545 = sbr.rel (%p543) target = $region72
        $region71: #{_noise_pred_forward.1} parent=59 // pred_region
          %s546 = sand.u32 %s156, 1
          %s547 = scalar_lea.sflag [#allocation3], %s546
          %s548 = sand.u32 %s156, 1
          %s549 = smul.addr %s548, 8
          %s550 = scalar_lea.vmem [#allocation8], %s549
          %s552 = ssub.s32 128, 128
          %553 = vsyncadd %s547, %s552
          %s554 = sadd.s32 %s44, %s43
          %s555 = smul.addr %s554, 128
          %s556 = scalar_lea.hbm %s4, %s555
          %s558 = sshll.u32 %s550, 4
          %s559 = int_to_ptr.vmem [resolvable:$true] %s558
          %561 = dma.hbm_to_vmem [thread:$0]  %s556, 128, %s559, %s547
        $region72: #{_noise_pred_forward.1} parent=59 // pred_fallthru
          _
      $region60: #{_noise_pred_forward.1} parent=5 // pred_fallthru
        _
      %p562 = scmp.le.s32.totalorder 1, %s36
      %p563 = scmp.lt.s32.totalorder %s36, 3
      %p564 = pnand %p562, %p563
      %p565 = pneg %p564
      // Predicated region
      $region73: #{_noise_pred_forward.1} parent=5 // pred_check
        _
      $region74: #{_noise_pred_forward.1} parent=5 // pred_check_branch
        %567 = sbr.rel (%p564) target = $region76
      $region75: #{_noise_pred_forward.1} parent=5 // pred_region
        %s568 = ssub.s32 %s36, 1
        // Predicated region
        $region77: #{_noise_pred_forward.1} parent=75 // pred_check
          %p569 = pneg %p69
        $region78: #{_noise_pred_forward.1} parent=75 // pred_check_branch
          %571 = sbr.rel (%p569) target = $region80
        $region79: #{_noise_pred_forward.1} parent=75 // pred_region
          %572 = dma.done [#allocation5], 16
        $region80: #{_noise_pred_forward.1} parent=75 // pred_fallthru
          _
        // Predicated region
        $region81: #{_noise_pred_forward.1} parent=75 // pred_check
          %p573 = pneg %p90
        $region82: #{_noise_pred_forward.1} parent=75 // pred_check_branch
          %575 = sbr.rel (%p573) target = $region84
        $region83: #{_noise_pred_forward.1} parent=75 // pred_region
          %576 = dma.done [#allocation7], 16
        $region84: #{_noise_pred_forward.1} parent=75 // pred_fallthru
          _
        %s577 = sand.u32 %s159, 1
        %s578 = scalar_lea.sflag [#allocation3], %s577
        %s579 = sand.u32 %s159, 1
        %s580 = smul.addr %s579, 8
        %s581 = scalar_lea.vmem [#allocation8], %s580
        // Predicated region
        $region85: #{_noise_pred_forward.1} parent=75 // pred_check
          %p582 = pneg %p172
        $region86: #{_noise_pred_forward.1} parent=75 // pred_check_branch
          %584 = sbr.rel (%p582) target = $region88
        $region87: #{_noise_pred_forward.1} parent=75 // pred_region
          %585 = dma.done %s578, 128
        $region88: #{_noise_pred_forward.1} parent=75 // pred_fallthru
          _
        // Predicated region
        $region89: #{_noise_pred_forward.1} parent=75 // pred_check
          %p586 = pneg %p193
        $region90: #{_noise_pred_forward.1} parent=75 // pred_check_branch
          %588 = sbr.rel (%p586) target = $region92
        $region91: #{_noise_pred_forward.1} parent=75 // pred_region
          %589 = dma.done [#allocation10], 256
        $region92: #{_noise_pred_forward.1} parent=75 // pred_fallthru
          _
        // Predicated region
        $region93: #{_noise_pred_forward.1} parent=75 // pred_check
          %p590 = pneg %p235
        $region94: #{_noise_pred_forward.1} parent=75 // pred_check_branch
          %592 = sbr.rel (%p590) target = $region96
        $region95: #{_noise_pred_forward.1} parent=75 // pred_region
          %593 = dma.done [#allocation10], 16
        $region96: #{_noise_pred_forward.1} parent=75 // pred_fallthru
          _
        // Predicated region
        $region97: #{_noise_pred_forward.1} parent=75 // pred_check
          %p594 = pneg %p277
        $region98: #{_noise_pred_forward.1} parent=75 // pred_check_branch
          %596 = sbr.rel (%p594) target = $region100
        $region99: #{_noise_pred_forward.1} parent=75 // pred_region
          %597 = dma.done [#allocation13], 16
        $region100: #{_noise_pred_forward.1} parent=75 // pred_fallthru
          _
        // Predicated region
        $region101: #{_noise_pred_forward.1} parent=75 // pred_check
          %p598 = pneg %p298
        $region102: #{_noise_pred_forward.1} parent=75 // pred_check_branch
          %600 = sbr.rel (%p598) target = $region104
        $region103: #{_noise_pred_forward.1} parent=75 // pred_region
          %601 = dma.done [#allocation13], 16
        $region104: #{_noise_pred_forward.1} parent=75 // pred_fallthru
          _
        // Predicated region
        $region105: #{_noise_pred_forward.1} parent=75 // pred_check
          %p602 = pneg %p319
        $region106: #{_noise_pred_forward.1} parent=75 // pred_check_branch
          %604 = sbr.rel (%p602) target = $region108
        $region107: #{_noise_pred_forward.1} parent=75 // pred_region
          %605 = dma.done [#allocation16], 16
        $region108: #{_noise_pred_forward.1} parent=75 // pred_fallthru
          _
        %606 = sfence
        %p607 = pneg %p69
        %p608 = pneg %p66
        %p609 = pneg %p90
        %p610 = pneg %p87
        %p611 = scmp.lt.s32.totalorder %s45, 1
        %s612 = scalar_select %p611, %s45, 1
        %s613 = scalar_lea.vmem %s2, %s612
        %p614 = pneg %p116
        %p615 = pneg %p113
        %p616 = scmp.lt.s32.totalorder %s45, 1
        %s617 = scalar_select %p616, %s45, 1
        %p618 = scmp.lt.s32.totalorder %s46, 0
        %s619 = scalar_select %p618, %s46, 0
        %s620 = sadd.s32 %s619, %s617
        %s621 = smul.addr %s620, 8
        %s622 = scalar_lea.vmem %s3, %s621
        %p623 = pneg %p144
        %p624 = pneg %p141
        %s625 = sand.u32 %s159, 1
        %s626 = scalar_lea.sflag [#allocation3], %s625
        %s627 = sand.u32 %s159, 1
        %s628 = smul.addr %s627, 8
        %s629 = scalar_lea.vmem [#allocation8], %s628
        %p630 = pneg %p172
        %p631 = pneg %p169
        %p632 = pneg %p193
        %p633 = pneg %p190
        %p634 = pneg %p214
        %p635 = pneg %p211
        %p636 = pneg %p235
        %p637 = pneg %p232
        %p638 = pneg %p256
        %p639 = pneg %p253
        %p640 = pneg %p277
        %p641 = pneg %p274
        %p642 = pneg %p298
        %p643 = pneg %p295
        %p644 = pneg %p319
        %p645 = pneg %p316
        %p646 = pneg %p340
        %p647 = pneg %p337
        %p648 = pneg %p361
        %p649 = pneg %p358
        %p650 = pneg %p389
        %p651 = pneg %p386
        %s652 = sand.u32 %s376, 1
        %s653 = scalar_lea.sflag [#allocation4], %s652
        %s654 = sand.u32 %s376, 1
        %s655 = smul.addr %s654, 8
        %s656 = scalar_lea.vmem [#allocation17], %s655
        %p657 = pneg %p417
        %p658 = pneg %p414
        %s659 = sand.u32 %s404, 1
        %s660 = scalar_lea.sflag [#allocation19], %s659
        %s661 = sand.u32 %s404, 1
        %s662 = smul.addr %s661, 8
        %s663 = scalar_lea.vmem [#allocation18], %s662
        %p664 = scmp.lt.s32.totalorder %s45, 1
        %s665 = scalar_select %p664, %s45, 1
        %s666 = scalar_lea.vmem %s2, %s665
        %p667 = scmp.lt.s32.totalorder %s45, 1
        %s668 = scalar_select %p667, %s45, 1
        %p669 = scmp.lt.s32.totalorder %s46, 0
        %s670 = scalar_select %p669, %s46, 0
        %s671 = sadd.s32 %s670, %s668
        %s672 = smul.addr %s671, 8
        %s673 = scalar_lea.vmem %s3, %s672
        %v675 = vld [vmem:[%s673] sm:$0xff]
        %v676 = vld [vmem:[%s581] sm:$0xff]
        %s677 = sld [smem:[#allocation2 + %s45]]
        %v678 = vstv %s677
        %v679 = vmul.f32 %v678, %v675
        %s680 = sld [smem:[#allocation6 + %s45]]
        %v681 = vstv %s680
        %v682 = vmul.f32 %v681, %v676
        %v683 = vadd.f32 %v679, %v682
        %vm684 = vcmask 261120
        %685 = vst.msk [vmem:[%s656] sm:$0xff] %vm684, %v683
        %v686 = vpack.c.bf16 %v683, %v683
        %v687 = vld [vmem:[#allocation9] sm:$0xf]
        %v688 = vld [vmem:[#allocation9 + $0x4] sm:$0xf]
        %v689 = vld [vmem:[#allocation9 + $0x8] sm:$0xf]
        %v690 = vld [vmem:[#allocation9 + $0xc] sm:$0xf]
        %v691 = vld [vmem:[%s666] sm:$0x1]
        %v693 = vlaneseq
        %v694 = vshrl.u32 %v693, 7
        %v695 = vsub.s32 0, %v694
        %v696 = vrot.slane %v691, %v695
        %v702 = vunpack.c.l.b16 %v687
        %v703 = vunpack.c.l.b16 %v688
        %v704 = vunpack.c.l.b16 %v689
        %v705 = vunpack.c.l.b16 %v690
        %v706 = vpack.c.b16 %v703, %v702
        %v707 = vpack.c.b16 %v705, %v704
        %v711 = vsel %vm684, %v686, 0
        %713 = vmatprep.subr.bf16.mxu0 0
        %714 = vmatpush1.bf16.msra.mxu0 0
        %715 = vmatprep.subr.bf16.mxu0 0
        %716 = vmatpush1.bf16.msra.mxu0 0
        %717 = vmatprep.subr.bf16.mxu0 0
        %718 = vmatpush1.bf16.msra.mxu0 0
        %719 = vmatprep.subr.bf16.mxu0 0
        %720 = vmatpush1.bf16.msra.mxu0 0
        %721 = vmatprep.subr.bf16.mxu0 0
        %722 = vmatpush1.bf16.msra.mxu0 0
        %723 = vmatprep.subr.bf16.mxu0 0
        %724 = vmatpush1.bf16.msra.mxu0 0
        %725 = vmatprep.subr.bf16.mxu0 0
        %726 = vmatpush1.bf16.msra.mxu0 %v707
        %727 = vmatprep.subr.bf16.mxu0 0
        %728 = vmatpush1.bf16.msra.mxu0 %v706
        %729 = vmatprep.subr.bf16.mxu0 0
        %730 = vmatpush2.bf16.msra.mxu0 0
        %731 = vmatprep.subr.bf16.mxu0 0
        %732 = vmatpush2.bf16.msra.mxu0 0
        %733 = vmatprep.subr.bf16.mxu0 0
        %734 = vmatpush2.bf16.msra.mxu0 0
        %735 = vmatprep.subr.bf16.mxu0 0
        %736 = vmatpush2.bf16.msra.mxu0 0
        %737 = vmatprep.subr.bf16.mxu0 0
        %738 = vmatpush2.bf16.msra.mxu0 0
        %739 = vmatprep.subr.bf16.mxu0 0
        %740 = vmatpush2.bf16.msra.mxu0 0
        %741 = vmatprep.subr.bf16.mxu0 0
        %742 = vmatpush2.bf16.msra.mxu0 0
        %743 = vmatprep.subr.bf16.mxu0 0
        %744 = vmatpush2.bf16.msra.mxu0 0
        %745 = vmatprep.mubr.bf16.mxu0 0
        %746 = vmatmul.mubr.bf16.gmra.mxu0 %v711
        %v747 = vpop.f32.mrf.mxu0
        %v748 = vadd.f32 %v696, %v747
        %v749 = vpop.f32.mrf.mxu0
        %v750 = vpop.f32.mrf.mxu0
        %v751 = vpop.f32.mrf.mxu0
        %752 = vdwg.mxu0
        %v753 = vld [vmem:[%s6] sm:$0x1]
        %v754 = vld [vmem:[#allocation11] sm:$0x1]
        %755 = vadd.xlane.f32.xlu0 %v748
        %v756 = vpop.xlane.xlu0 %755
        %v757 = vmul.f32 %v756, 0.03125
        %v758 = vmul.f32 %v748, %v748
        %759 = vadd.xlane.f32.xlu0 %v758
        %v760 = vpop.xlane.xlu0 %759
        %v761 = vmul.f32 %v760, 0.03125
        %v762 = vmul.f32 %v757, %v757
        %v763 = vsub.f32 %v761, %v762
        %v764 = vmax.f32 %v763, 0.0
        %v765 = vsub.f32 %v748, %v757
        %v766 = vadd.f32 %v764, 1e-05
        %v767 = vrsqrt.pop %v766
        %v768 = vmul.f32 %v765, %v767
        %v770 = vlaneseq
        %v771 = vshrl.u32 %v770, 7
        %v772 = vsub.s32 0, %v771
        %v773 = vrot.slane %v753, %v772
        %v775 = vmul.f32 %v768, %v773
        %v777 = vlaneseq
        %v778 = vshrl.u32 %v777, 7
        %v779 = vsub.s32 0, %v778
        %v780 = vrot.slane %v754, %v779
        %v782 = vadd.f32 %v775, %v780
        %v783 = vmax.f32 %v782, 0.0
        %v784 = vpack.c.bf16 %v783, %v783
        %v785 = vld [vmem:[%s8] sm:$0xf]
        %v786 = vld [vmem:[%s8 + $0x4] sm:$0xf]
        %v787 = vld [vmem:[%s8 + $0x8] sm:$0xf]
        %v788 = vld [vmem:[%s8 + $0xc] sm:$0xf]
        %v789 = vld [vmem:[%s8 + $0x10] sm:$0xf]
        %v790 = vld [vmem:[%s8 + $0x14] sm:$0xf]
        %v791 = vld [vmem:[%s8 + $0x18] sm:$0xf]
        %v792 = vld [vmem:[%s8 + $0x1c] sm:$0xf]
        %v793 = vld [vmem:[%s8 + $0x20] sm:$0xf]
        %v794 = vld [vmem:[%s8 + $0x24] sm:$0xf]
        %v795 = vld [vmem:[%s8 + $0x28] sm:$0xf]
        %v796 = vld [vmem:[%s8 + $0x2c] sm:$0xf]
        %v797 = vld [vmem:[%s8 + $0x30] sm:$0xf]
        %v798 = vld [vmem:[%s8 + $0x34] sm:$0xf]
        %v799 = vld [vmem:[%s8 + $0x38] sm:$0xf]
        %v800 = vld [vmem:[%s8 + $0x3c] sm:$0xf]
        %v801 = vld [vmem:[#allocation12] sm:$0x1]
        %v803 = vlaneseq
        %v804 = vshrl.u32 %v803, 7
        %v805 = vsub.s32 0, %v804
        %v806 = vrot.slane %v801, %v805
        %v824 = vunpack.c.l.b16 %v785
        %v825 = vunpack.c.l.b16 %v786
        %v826 = vunpack.c.l.b16 %v787
        %v827 = vunpack.c.l.b16 %v788
        %v828 = vunpack.c.l.b16 %v789
        %v829 = vunpack.c.l.b16 %v790
        %v830 = vunpack.c.l.b16 %v791
        %v831 = vunpack.c.l.b16 %v792
        %v832 = vunpack.c.l.b16 %v793
        %v833 = vunpack.c.l.b16 %v794
        %v834 = vunpack.c.l.b16 %v795
        %v835 = vunpack.c.l.b16 %v796
        %v836 = vunpack.c.l.b16 %v797
        %v837 = vunpack.c.l.b16 %v798
        %v838 = vunpack.c.l.b16 %v799
        %v839 = vunpack.c.l.b16 %v800
        %v840 = vpack.c.b16 %v825, %v824
        %v841 = vpack.c.b16 %v827, %v826
        %v842 = vpack.c.b16 %v829, %v828
        %v843 = vpack.c.b16 %v831, %v830
        %v844 = vpack.c.b16 %v833, %v832
        %v845 = vpack.c.b16 %v835, %v834
        %v846 = vpack.c.b16 %v837, %v836
        %v847 = vpack.c.b16 %v839, %v838
        %856 = vmatprep.subr.bf16.mxu0 0
        %857 = vmatpush1.bf16.msra.mxu0 %v847
        %858 = vmatprep.subr.bf16.mxu0 0
        %859 = vmatpush1.bf16.msra.mxu0 %v846
        %860 = vmatprep.subr.bf16.mxu0 0
        %861 = vmatpush1.bf16.msra.mxu0 %v845
        %862 = vmatprep.subr.bf16.mxu0 0
        %863 = vmatpush1.bf16.msra.mxu0 %v844
        %864 = vmatprep.subr.bf16.mxu0 0
        %865 = vmatpush1.bf16.msra.mxu0 %v843
        %866 = vmatprep.subr.bf16.mxu0 0
        %867 = vmatpush1.bf16.msra.mxu0 %v842
        %868 = vmatprep.subr.bf16.mxu0 0
        %869 = vmatpush1.bf16.msra.mxu0 %v841
        %870 = vmatprep.subr.bf16.mxu0 0
        %871 = vmatpush1.bf16.msra.mxu0 %v840
        %872 = vmatprep.subr.bf16.mxu0 0
        %873 = vmatpush2.bf16.msra.mxu0 0
        %874 = vmatprep.subr.bf16.mxu0 0
        %875 = vmatpush2.bf16.msra.mxu0 0
        %876 = vmatprep.subr.bf16.mxu0 0
        %877 = vmatpush2.bf16.msra.mxu0 0
        %878 = vmatprep.subr.bf16.mxu0 0
        %879 = vmatpush2.bf16.msra.mxu0 0
        %880 = vmatprep.subr.bf16.mxu0 0
        %881 = vmatpush2.bf16.msra.mxu0 0
        %882 = vmatprep.subr.bf16.mxu0 0
        %883 = vmatpush2.bf16.msra.mxu0 0
        %884 = vmatprep.subr.bf16.mxu0 0
        %885 = vmatpush2.bf16.msra.mxu0 0
        %886 = vmatprep.subr.bf16.mxu0 0
        %887 = vmatpush2.bf16.msra.mxu0 0
        %888 = vmatprep.mubr.bf16.mxu0 0
        %889 = vmatmul.mubr.bf16.gmra.mxu0 %v784
        %v890 = vpop.f32.mrf.mxu0
        %v891 = vadd.f32 %v806, %v890
        %v892 = vpop.f32.mrf.mxu0
        %v893 = vpop.f32.mrf.mxu0
        %v894 = vpop.f32.mrf.mxu0
        %895 = vdwg.mxu0
        %v896 = vld [vmem:[#allocation14] sm:$0x1]
        %v897 = vld [vmem:[#allocation15] sm:$0x1]
        %898 = vadd.xlane.f32.xlu0 %v891
        %v899 = vpop.xlane.xlu0 %898
        %v900 = vmul.f32 %v899, 0.03125
        %v901 = vmul.f32 %v891, %v891
        %902 = vadd.xlane.f32.xlu0 %v901
        %v903 = vpop.xlane.xlu0 %902
        %v904 = vmul.f32 %v903, 0.03125
        %v905 = vmul.f32 %v900, %v900
        %v906 = vsub.f32 %v904, %v905
        %v907 = vmax.f32 %v906, 0.0
        %v908 = vsub.f32 %v891, %v900
        %v909 = vadd.f32 %v907, 1e-05
        %v910 = vrsqrt.pop %v909
        %v911 = vmul.f32 %v908, %v910
        %v913 = vlaneseq
        %v914 = vshrl.u32 %v913, 7
        %v915 = vsub.s32 0, %v914
        %v916 = vrot.slane %v896, %v915
        %v918 = vmul.f32 %v911, %v916
        %v920 = vlaneseq
        %v921 = vshrl.u32 %v920, 7
        %v922 = vsub.s32 0, %v921
        %v923 = vrot.slane %v897, %v922
        %v925 = vadd.f32 %v918, %v923
        %v926 = vmax.f32 %v925, 0.0
        %v927 = vpack.c.bf16 %v926, %v926
        %v928 = vld [vmem:[%s12] sm:$0xf]
        %v929 = vld [vmem:[%s12 + $0x4] sm:$0xf]
        %v930 = vld [vmem:[%s12 + $0x8] sm:$0xf]
        %v931 = vld [vmem:[%s12 + $0xc] sm:$0xf]
        %v932 = vld [vmem:[%s12 + $0x10] sm:$0xf]
        %v933 = vld [vmem:[%s12 + $0x14] sm:$0xf]
        %v934 = vld [vmem:[%s12 + $0x18] sm:$0xf]
        %v935 = vld [vmem:[%s12 + $0x1c] sm:$0xf]
        %v936 = vld [vmem:[%s12 + $0x20] sm:$0xf]
        %v937 = vld [vmem:[%s12 + $0x24] sm:$0xf]
        %v938 = vld [vmem:[%s12 + $0x28] sm:$0xf]
        %v939 = vld [vmem:[%s12 + $0x2c] sm:$0xf]
        %v940 = vld [vmem:[%s12 + $0x30] sm:$0xf]
        %v941 = vld [vmem:[%s12 + $0x34] sm:$0xf]
        %v942 = vld [vmem:[%s12 + $0x38] sm:$0xf]
        %v943 = vld [vmem:[%s12 + $0x3c] sm:$0xf]
        %v944 = vld [vmem:[%s13] sm:$0x1]
        %v946 = vlaneseq
        %v947 = vshrl.u32 %v946, 7
        %v948 = vsub.s32 0, %v947
        %v949 = vrot.slane %v944, %v948
        %v967 = vunpack.c.l.b16 %v928
        %v968 = vunpack.c.l.b16 %v929
        %v969 = vunpack.c.l.b16 %v930
        %v970 = vunpack.c.l.b16 %v931
        %v971 = vunpack.c.l.b16 %v932
        %v972 = vunpack.c.l.b16 %v933
        %v973 = vunpack.c.l.b16 %v934
        %v974 = vunpack.c.l.b16 %v935
        %v975 = vunpack.c.l.b16 %v936
        %v976 = vunpack.c.l.b16 %v937
        %v977 = vunpack.c.l.b16 %v938
        %v978 = vunpack.c.l.b16 %v939
        %v979 = vunpack.c.l.b16 %v940
        %v980 = vunpack.c.l.b16 %v941
        %v981 = vunpack.c.l.b16 %v942
        %v982 = vunpack.c.l.b16 %v943
        %v983 = vpack.c.b16 %v968, %v967
        %v984 = vpack.c.b16 %v970, %v969
        %v985 = vpack.c.b16 %v972, %v971
        %v986 = vpack.c.b16 %v974, %v973
        %v987 = vpack.c.b16 %v976, %v975
        %v988 = vpack.c.b16 %v978, %v977
        %v989 = vpack.c.b16 %v980, %v979
        %v990 = vpack.c.b16 %v982, %v981
        %999 = vmatprep.subr.bf16.mxu0 0
        %1000 = vmatpush1.bf16.msra.mxu0 %v990
        %1001 = vmatprep.subr.bf16.mxu0 0
        %1002 = vmatpush1.bf16.msra.mxu0 %v989
        %1003 = vmatprep.subr.bf16.mxu0 0
        %1004 = vmatpush1.bf16.msra.mxu0 %v988
        %1005 = vmatprep.subr.bf16.mxu0 0
        %1006 = vmatpush1.bf16.msra.mxu0 %v987
        %1007 = vmatprep.subr.bf16.mxu0 0
        %1008 = vmatpush1.bf16.msra.mxu0 %v986
        %1009 = vmatprep.subr.bf16.mxu0 0
        %1010 = vmatpush1.bf16.msra.mxu0 %v985
        %1011 = vmatprep.subr.bf16.mxu0 0
        %1012 = vmatpush1.bf16.msra.mxu0 %v984
        %1013 = vmatprep.subr.bf16.mxu0 0
        %1014 = vmatpush1.bf16.msra.mxu0 %v983
        %1015 = vmatprep.subr.bf16.mxu0 0
        %1016 = vmatpush2.bf16.msra.mxu0 0
        %1017 = vmatprep.subr.bf16.mxu0 0
        %1018 = vmatpush2.bf16.msra.mxu0 0
        %1019 = vmatprep.subr.bf16.mxu0 0
        %1020 = vmatpush2.bf16.msra.mxu0 0
        %1021 = vmatprep.subr.bf16.mxu0 0
        %1022 = vmatpush2.bf16.msra.mxu0 0
        %1023 = vmatprep.subr.bf16.mxu0 0
        %1024 = vmatpush2.bf16.msra.mxu0 0
        %1025 = vmatprep.subr.bf16.mxu0 0
        %1026 = vmatpush2.bf16.msra.mxu0 0
        %1027 = vmatprep.subr.bf16.mxu0 0
        %1028 = vmatpush2.bf16.msra.mxu0 0
        %1029 = vmatprep.subr.bf16.mxu0 0
        %1030 = vmatpush2.bf16.msra.mxu0 0
        %1031 = vmatprep.mubr.bf16.mxu0 0
        %1032 = vmatmul.mubr.bf16.gmra.mxu0 %v927
        %v1033 = vpop.f32.mrf.mxu0
        %v1034 = vadd.f32 %v949, %v1033
        %v1035 = vpop.f32.mrf.mxu0
        %v1036 = vpop.f32.mrf.mxu0
        %v1037 = vpop.f32.mrf.mxu0
        %1038 = vdwg.mxu0
        %1039 = vst.msk [vmem:[%s663] sm:$0xff] %vm684, %v1034
        %s1040 = sand.u32 %s376, 1
        %s1041 = scalar_lea.sflag [#allocation4], %s1040
        %s1042 = sand.u32 %s376, 1
        %s1043 = smul.addr %s1042, 8
        %s1044 = scalar_lea.vmem [#allocation17], %s1043
        %s1045 = sand.u32 %s404, 1
        %s1046 = scalar_lea.sflag [#allocation19], %s1045
        %s1047 = sand.u32 %s404, 1
        %s1048 = smul.addr %s1047, 8
        %s1049 = scalar_lea.vmem [#allocation18], %s1048
        // Predicated region
        $region109: #{_noise_pred_forward.1} parent=75 // pred_check
          %p1050 = pneg %p386
        $region110: #{_noise_pred_forward.1} parent=75 // pred_check_branch
          %1052 = sbr.rel (%p1050) target = $region112
        $region111: #{_noise_pred_forward.1} parent=75 // pred_region
          %s1054 = ssub.s32 128, 128
          %1055 = vsyncadd %s1041, %s1054
          %s1056 = sadd.s32 %s46, %s45
          %s1057 = smul.addr %s1056, 128
          %s1058 = scalar_lea.hbm %s14, %s1057
          %s1060 = sshll.u32 %s1044, 4
          %s1061 = int_to_ptr.vmem [resolvable:$true] %s1060
          %1063 = dma.vmem_to_hbm [thread:$0]  %s1061, 128, %s1058, %s1041
        $region112: #{_noise_pred_forward.1} parent=75 // pred_fallthru
          _
        // Predicated region
        $region113: #{_noise_pred_forward.1} parent=75 // pred_check
          %p1064 = pneg %p414
        $region114: #{_noise_pred_forward.1} parent=75 // pred_check_branch
          %1066 = sbr.rel (%p1064) target = $region116
        $region115: #{_noise_pred_forward.1} parent=75 // pred_region
          %s1068 = ssub.s32 128, 128
          %1069 = vsyncadd %s1046, %s1068
          %s1070 = sadd.s32 %s46, %s45
          %s1071 = smul.addr %s1070, 128
          %s1072 = scalar_lea.hbm %s15, %s1071
          %s1074 = sshll.u32 %s1049, 4
          %s1075 = int_to_ptr.vmem [resolvable:$true] %s1074
          %1077 = dma.vmem_to_hbm [thread:$0]  %s1075, 128, %s1072, %s1046
        $region116: #{_noise_pred_forward.1} parent=75 // pred_fallthru
          _
      $region76: #{_noise_pred_forward.1} parent=5 // pred_fallthru
        _
      %p1078 = scmp.le.s32.totalorder 2, %s36
      // Predicated region
      $region117: #{_noise_pred_forward.1} parent=5 // pred_check
        %p1079 = pneg %p1078
      $region118: #{_noise_pred_forward.1} parent=5 // pred_check_branch
        %1081 = sbr.rel (%p1079) target = $region120
      $region119: #{_noise_pred_forward.1} parent=5 // pred_region
        %s1082 = ssub.s32 %s36, 2
        // Predicated region
        $region121: #{_noise_pred_forward.1} parent=119 // pred_check
          %p1083 = pneg %p392
        $region122: #{_noise_pred_forward.1} parent=119 // pred_check_branch
          %1085 = sbr.rel (%p1083) target = $region124
        $region123: #{_noise_pred_forward.1} parent=119 // pred_region
          %s1086 = sand.u32 %s377, 1
          %s1087 = scalar_lea.sflag [#allocation4], %s1086
          %s1088 = sand.u32 %s377, 1
          %s1089 = smul.addr %s1088, 8
          %s1090 = scalar_lea.vmem [#allocation17], %s1089
          %1091 = dma.done %s1087, 128
        $region124: #{_noise_pred_forward.1} parent=119 // pred_fallthru
          _
        // Predicated region
        $region125: #{_noise_pred_forward.1} parent=119 // pred_check
          %p1092 = pneg %p420
        $region126: #{_noise_pred_forward.1} parent=119 // pred_check_branch
          %1094 = sbr.rel (%p1092) target = $region128
        $region127: #{_noise_pred_forward.1} parent=119 // pred_region
          %s1095 = sand.u32 %s405, 1
          %s1096 = scalar_lea.sflag [#allocation19], %s1095
          %s1097 = sand.u32 %s405, 1
          %s1098 = smul.addr %s1097, 8
          %s1099 = scalar_lea.vmem [#allocation18], %s1098
          %1100 = dma.done %s1096, 128
        $region128: #{_noise_pred_forward.1} parent=119 // pred_fallthru
          _
      $region120: #{_noise_pred_forward.1} parent=5 // pred_fallthru
        _
    $region6: #{_noise_pred_forward.1} parent=1 // loop_footer
      %s40 = sadd.s32 1, %s36
    $region7: #{_noise_pred_forward.1} parent=1 // loop_footer_branch
      %35 = sbr.rel target = $region3
    $region8: #{_noise_pred_forward.1} parent=1 // loop_exit
      _
    %1101 = vsyncpa [#allocation3], 1
    %s1102 = scalar_lea.sflag [#allocation3], 1
    %1103 = vsyncpa %s1102, 1
    %1104 = vsyncpa [#allocation10], 1
    %1105 = vsyncpa [#allocation13], 1
    %1106 = vsyncpa [#allocation16], 1
    %1107 = vsyncpa [#allocation4], 1
    %s1108 = scalar_lea.sflag [#allocation4], 1
    %1109 = vsyncpa %s1108, 1
    %1110 = vsyncpa [#allocation19], 1
    %s1111 = scalar_lea.sflag [#allocation19], 1
    %1112 = vsyncpa %s1111, 1
    %1113 = vsyncpa [#allocation5], 1
    %s1114 = scalar_lea.sflag [#allocation5], 1
    %1115 = vsyncpa %s1114, 1
    %1116 = vsyncpa [#allocation7], 1

</llo_original>
